<compile_context>
chip_gen: v7x
topology: tpu7x:2x2x1
jax: 0.10.0
libtpu: 0.0.40
codegen_flags: <defaults>
</compile_context>

<pallas_src>
import math

import jax
import jax.numpy as jnp
from jax.experimental import pallas as pl
from jax.experimental.pallas import tpu as pltpu

# ---- model hyper-parameters (small, consistent with the module) -------------
BATCH = 2
SEQ = 8
D_MODEL = 32
N_HEAD = 4
DIM_FF = 64
HEAD_DIM = D_MODEL // N_HEAD
LN_EPS = 1e-5
ROWS = BATCH * SEQ            # flattened (batch, seq) rows

# The spec is a single CustomEncoderLayer.  Setting NUM_LAYERS > 1 fuses a
# stack of weight-shared clones (deepcopy of one initialized layer) with zero
# extra HBM traffic; activations stay VMEM-resident between layers.
NUM_LAYERS = 1

# ---- packed-parameter layout -------------------------------------------------
# Weight slab: (D_MODEL, 384), 128-lane-aligned segments.
W_SLAB_COLS = 3 * 128
OFF_WQKV = 0       # (E, 3E)  in-proj weight (pre-transposed, Q cols pre-scaled)
OFF_WO = 128       # (E, E)   out-proj weight (pre-transposed)
OFF_W1 = 256       # (E, FF)  linear1 weight (pre-transposed)

# Vector slab: (8, 128), one bias / LN vector per row.
VEC_ROWS, VEC_COLS = 8, 128
ROW_BQKV, ROW_BO, ROW_B1, ROW_B2, ROW_G1, ROW_BE1, ROW_G2, ROW_BE2 = range(8)

# ---- lane-dense packed output layout: one (ROWS, 128) slab -------------------
OUT_COLS = 128
OUT_X_OFF = 0              # lanes [0, 32)  : encoder output row
OUT_ATTN_OFF = D_MODEL     # lanes [32, 40) : head-averaged attention row


def _layer_norm(x, gamma, beta):
    # LayerNorm over last dim, biased variance (matches nn.LayerNorm).
    mean = jnp.mean(x, axis=-1, keepdims=True)
    var = jnp.mean((x - mean) ** 2, axis=-1, keepdims=True)
    inv = jax.lax.rsqrt(var + LN_EPS)
    return (x - mean) * inv * gamma + beta


def encoder_kernel(x_ref, wslab_ref, w2_ref, vec_ref, out_ref):
    # ---- load packed parameters once ----------------------------------------
    wqkv = wslab_ref[:, OFF_WQKV:OFF_WQKV + 3 * D_MODEL]   # (E, 3E)
    wo = wslab_ref[:, OFF_WO:OFF_WO + D_MODEL]             # (E, E)
    w1 = wslab_ref[:, OFF_W1:OFF_W1 + DIM_FF]              # (E, FF)
    w2 = w2_ref[...]                                       # (FF, E)

    bqkv = vec_ref[ROW_BQKV:ROW_BQKV + 1, 0:3 * D_MODEL]   # Q part pre-scaled
    bo = vec_ref[ROW_BO:ROW_BO + 1, 0:D_MODEL]
    b1 = vec_ref[ROW_B1:ROW_B1 + 1, 0:DIM_FF]
    b2 = vec_ref[ROW_B2:ROW_B2 + 1, 0:D_MODEL]
    g1 = vec_ref[ROW_G1:ROW_G1 + 1, 0:D_MODEL]
    be1 = vec_ref[ROW_BE1:ROW_BE1 + 1, 0:D_MODEL]
    g2 = vec_ref[ROW_G2:ROW_G2 + 1, 0:D_MODEL]
    be2 = vec_ref[ROW_BE2:ROW_BE2 + 1, 0:D_MODEL]

    def layer(x_flat, want_attn):
        # ---- multi-head self attention (q = k = v = x) -----------------------
        # Attention scale already folded into the Q columns of wqkv / bqkv.
        qkv = jnp.dot(x_flat, wqkv, preferred_element_type=jnp.float32) + bqkv
        qkv3 = qkv.reshape(BATCH, SEQ, 3 * D_MODEL)

        def heads(base):
            # (N_HEAD * BATCH, SEQ, HEAD_DIM): leading-axis stack of head slices
            return jnp.concatenate(
                [qkv3[:, :, base + h * HEAD_DIM: base + (h + 1) * HEAD_DIM]
                 for h in range(N_HEAD)], axis=0)

        qh = heads(0)
        kh = heads(D_MODEL)
        vh = heads(2 * D_MODEL)

        # One batched einsum pair + one softmax for all (head, batch) pairs.
        s = jnp.einsum('nqd,nkd->nqk', qh, kh,
                       preferred_element_type=jnp.float32)      # (H*B, S, S)
        s = s - jnp.max(s, axis=-1, keepdims=True)
        p = jnp.exp(s)
        p = p / jnp.sum(p, axis=-1, keepdims=True)               # exact softmax
        ctx = jnp.einsum('nqk,nkd->nqd', p, vh,
                         preferred_element_type=jnp.float32)     # (H*B, S, Dh)

        # Merge heads back into lanes: (B, S, E) -> (B*S, E).
        merged = jnp.concatenate(
            [ctx[h * BATCH:(h + 1) * BATCH] for h in range(N_HEAD)], axis=-1)
        attn_out = jnp.dot(merged.reshape(ROWS, D_MODEL), wo,
                           preferred_element_type=jnp.float32) + bo

        # ---- add & norm 1 -----------------------------------------------------
        x1 = _layer_norm(x_flat + attn_out, g1, be1)

        # ---- feed-forward (ReLU) ----------------------------------------------
        h1 = jnp.maximum(
            jnp.dot(x1, w1, preferred_element_type=jnp.float32) + b1, 0.0)
        ff = jnp.dot(h1, w2, preferred_element_type=jnp.float32) + b2

        # ---- add & norm 2 -----------------------------------------------------
        x2 = _layer_norm(x1 + ff, g2, be2)

        if want_attn:
            attn = sum(p[h * BATCH:(h + 1) * BATCH] for h in range(N_HEAD))
            return x2, attn * (1.0 / N_HEAD)                    # (B, S, S)
        return x2, None

    x = x_ref[...]                                              # (B*S, E)
    attn = None
    for li in range(NUM_LAYERS):
        x, a = layer(x, want_attn=(li == NUM_LAYERS - 1))
        if a is not None:
            attn = a

    # Single lane-dense (ROWS, 128) store: [x | attn rows | zero pad].
    attn_rows = attn.reshape(ROWS, SEQ)
    pad = jnp.zeros((ROWS, OUT_COLS - D_MODEL - SEQ), jnp.float32)
    out_ref[...] = jnp.concatenate([x, attn_rows, pad], axis=-1)


@jax.jit
def encoder_layer_forward(src, params):
    B, S, E = src.shape
    x_flat = src.reshape(B * S, E)                 # free XLA-level reshape

    flops_per_layer = (
        2 * (B * S) * E * (3 * E)                  # qkv projection
        + 2 * B * N_HEAD * 2 * S * S * HEAD_DIM    # scores + p@v
        + 2 * (B * S) * E * E                      # out projection
        + 2 * (B * S) * E * DIM_FF                 # linear1
        + 2 * (B * S) * DIM_FF * E                 # linear2
    )
    cost = pl.CostEstimate(
        flops=NUM_LAYERS * flops_per_layer,
        transcendentals=NUM_LAYERS * (B * N_HEAD * S * S + 2 * B * S),
        bytes_accessed=4 * (B * S * E + D_MODEL * W_SLAB_COLS
                            + DIM_FF * D_MODEL + VEC_ROWS * VEC_COLS
                            + B * S * OUT_COLS),
    )

    vmem = pltpu.MemorySpace.VMEM
    slab = pl.pallas_call(
        encoder_kernel,
        out_shape=jax.ShapeDtypeStruct((B * S, OUT_COLS), jnp.float32),
        in_specs=[pl.BlockSpec(memory_space=vmem) for _ in range(4)],
        out_specs=pl.BlockSpec(memory_space=vmem),
        cost_estimate=cost,
    )(x_flat, params["w_slab"], params["w2_t"], params["vec_slab"])

    out = slab[:, OUT_X_OFF:OUT_X_OFF + E].reshape(B, S, E)
    attn = slab[:, OUT_ATTN_OFF:OUT_ATTN_OFF + S].reshape(B, S, S)
    return out, attn


def pack_params(wqkv_t, bqkv, wo_t, bo, w1_t, b1, w2_t, b2, g1, be1, g2, be2):
    # Fold the attention scale 1/sqrt(HEAD_DIM) into the Q projection once at
    # pack time (zero runtime cost).
    scale = 1.0 / math.sqrt(HEAD_DIM)
    wqkv_t = wqkv_t.at[:, 0:D_MODEL].multiply(scale)
    bqkv = bqkv.at[0:D_MODEL].multiply(scale)

    w_slab = jnp.zeros((D_MODEL, W_SLAB_COLS), jnp.float32)
    w_slab = w_slab.at[:, OFF_WQKV:OFF_WQKV + 3 * D_MODEL].set(wqkv_t)
    w_slab = w_slab.at[:, OFF_WO:OFF_WO + D_MODEL].set(wo_t)
    w_slab = w_slab.at[:, OFF_W1:OFF_W1 + DIM_FF].set(w1_t)

    vec_slab = jnp.zeros((VEC_ROWS, VEC_COLS), jnp.float32)
    vec_slab = vec_slab.at[ROW_BQKV, 0:3 * D_MODEL].set(bqkv)
    vec_slab = vec_slab.at[ROW_BO, 0:D_MODEL].set(bo)
    vec_slab = vec_slab.at[ROW_B1, 0:DIM_FF].set(b1)
    vec_slab = vec_slab.at[ROW_B2, 0:D_MODEL].set(b2)
    vec_slab = vec_slab.at[ROW_G1, 0:D_MODEL].set(g1)
    vec_slab = vec_slab.at[ROW_BE1, 0:D_MODEL].set(be1)
    vec_slab = vec_slab.at[ROW_G2, 0:D_MODEL].set(g2)
    vec_slab = vec_slab.at[ROW_BE2, 0:D_MODEL].set(be2)

    return {"w_slab": w_slab, "w2_t": w2_t, "vec_slab": vec_slab}


def init_params(key):
    ks = jax.random.split(key, 4)
    std = 0.02
    # Weights stored pre-transposed so the kernel computes x @ W_t.
    wqkv_t = std * jax.random.normal(ks[0], (D_MODEL, 3 * D_MODEL), jnp.float32)
    wo_t = std * jax.random.normal(ks[1], (D_MODEL, D_MODEL), jnp.float32)
    w1_t = std * jax.random.normal(ks[2], (D_MODEL, DIM_FF), jnp.float32)
    w2_t = std * jax.random.normal(ks[3], (DIM_FF, D_MODEL), jnp.float32)
    bqkv = jnp.zeros((3 * D_MODEL,), jnp.float32)
    bo = jnp.zeros((D_MODEL,), jnp.float32)
    b1 = jnp.zeros((DIM_FF,), jnp.float32)
    b2 = jnp.zeros((D_MODEL,), jnp.float32)
    g1 = jnp.ones((D_MODEL,), jnp.float32)
    be1 = jnp.zeros((D_MODEL,), jnp.float32)
    g2 = jnp.ones((D_MODEL,), jnp.float32)
    be2 = jnp.zeros((D_MODEL,), jnp.float32)
    return pack_params(wqkv_t, bqkv, wo_t, bo, w1_t, b1, w2_t, b2,
                       g1, be1, g2, be2)


if __name__ == "__main__":
    key = jax.random.PRNGKey(0)
    k_x, k_p = jax.random.split(key)
    src = jax.random.normal(k_x, (BATCH, SEQ, D_MODEL), jnp.float32)
    params = init_params(k_p)

    # TODO(synk): src_mask / src_key_padding_mask are not wired (forward is
    # exercised with mask=None here); dropout is identity (eval mode).
    out, attn = encoder_layer_forward(src, params)
    out = jax.block_until_ready(out)
    attn = jax.block_until_ready(attn)

    assert out.shape == (BATCH, SEQ, D_MODEL)
    assert attn.shape == (BATCH, SEQ, SEQ)
    assert bool(jnp.all(jnp.isfinite(out))) and bool(jnp.all(jnp.isfinite(attn)))
    # Exact softmax -> head-averaged attention rows sum to 1.
    assert bool(jnp.all(jnp.abs(jnp.sum(attn, axis=-1) - 1.0) < 1e-3))
    print("KERNEL_OK")
</pallas_src>

<mosaic_0001>
module attributes {stable_mosaic.version = 11 : i64} {
  func.func @encoder_kernel(%arg0: memref<16x32xf32, #tpu.memory_space<vmem>>, %arg1: memref<32x384xf32, #tpu.memory_space<vmem>>, %arg2: memref<64x32xf32, #tpu.memory_space<vmem>>, %arg3: memref<8x128xf32, #tpu.memory_space<vmem>>, %arg4: memref<16x128xf32, #tpu.memory_space<vmem>>) attributes {dimension_semantics = [], scalar_prefetch = 0 : i64, scratch_operands = 0 : i64, tpu.core_type = #tpu.core_type<tc>} {
    %c0 = arith.constant 0 : index
    %c0_0 = arith.constant 0 : index
    %0 = vector.load %arg1[%c0, %c0_0] : memref<32x384xf32, #tpu.memory_space<vmem>>, vector<32x96xf32>
    %c0_1 = arith.constant 0 : index
    %c128 = arith.constant 128 : index
    %1 = vector.load %arg1[%c0_1, %c128] : memref<32x384xf32, #tpu.memory_space<vmem>>, vector<32x32xf32>
    %c0_2 = arith.constant 0 : index
    %c256 = arith.constant 256 : index
    %2 = vector.load %arg1[%c0_2, %c256] : memref<32x384xf32, #tpu.memory_space<vmem>>, vector<32x64xf32>
    %c0_3 = arith.constant 0 : index
    %c0_4 = arith.constant 0 : index
    %3 = vector.load %arg2[%c0_3, %c0_4] : memref<64x32xf32, #tpu.memory_space<vmem>>, vector<64x32xf32>
    %c0_5 = arith.constant 0 : index
    %c0_6 = arith.constant 0 : index
    %4 = vector.load %arg3[%c0_5, %c0_6] : memref<8x128xf32, #tpu.memory_space<vmem>>, vector<1x96xf32>
    %c1 = arith.constant 1 : index
    %c0_7 = arith.constant 0 : index
    %5 = vector.load %arg3[%c1, %c0_7] : memref<8x128xf32, #tpu.memory_space<vmem>>, vector<1x32xf32>
    %c2 = arith.constant 2 : index
    %c0_8 = arith.constant 0 : index
    %6 = vector.load %arg3[%c2, %c0_8] : memref<8x128xf32, #tpu.memory_space<vmem>>, vector<1x64xf32>
    %c3 = arith.constant 3 : index
    %c0_9 = arith.constant 0 : index
    %7 = vector.load %arg3[%c3, %c0_9] : memref<8x128xf32, #tpu.memory_space<vmem>>, vector<1x32xf32>
    %c4 = arith.constant 4 : index
    %c0_10 = arith.constant 0 : index
    %8 = vector.load %arg3[%c4, %c0_10] : memref<8x128xf32, #tpu.memory_space<vmem>>, vector<1x32xf32>
    %c5 = arith.constant 5 : index
    %c0_11 = arith.constant 0 : index
    %9 = vector.load %arg3[%c5, %c0_11] : memref<8x128xf32, #tpu.memory_space<vmem>>, vector<1x32xf32>
    %c6 = arith.constant 6 : index
    %c0_12 = arith.constant 0 : index
    %10 = vector.load %arg3[%c6, %c0_12] : memref<8x128xf32, #tpu.memory_space<vmem>>, vector<1x32xf32>
    %c7 = arith.constant 7 : index
    %c0_13 = arith.constant 0 : index
    %11 = vector.load %arg3[%c7, %c0_13] : memref<8x128xf32, #tpu.memory_space<vmem>>, vector<1x32xf32>
    %c0_14 = arith.constant 0 : index
    %c0_15 = arith.constant 0 : index
    %12 = vector.load %arg0[%c0_14, %c0_15] : memref<16x32xf32, #tpu.memory_space<vmem>>, vector<16x32xf32>
    %cst = arith.constant dense<0.000000e+00> : vector<16x96xf32>
    %13 = tpu.matmul %12, %0, %cst {dimension_numbers = #tpu.dot_dimension_numbers<[1], [0], [0], [1], [0, 0, 1, 1], [], []>} : vector<16x32xf32>, vector<32x96xf32>, vector<16x96xf32> -> vector<16x96xf32>
    %14 = vector.broadcast %4 : vector<1x96xf32> to vector<16x96xf32>
    %15 = arith.addf %13, %14 : vector<16x96xf32>
    %16 = vector.shape_cast %15 : vector<16x96xf32> to vector<2x8x96xf32>
    %17 = vector.extract_strided_slice %16 {offsets = [0, 0, 0], sizes = [2, 8, 8], strides = [1, 1, 1]} : vector<2x8x96xf32> to vector<2x8x8xf32>
    %18 = vector.extract_strided_slice %16 {offsets = [0, 0, 8], sizes = [2, 8, 8], strides = [1, 1, 1]} : vector<2x8x96xf32> to vector<2x8x8xf32>
    %19 = vector.extract_strided_slice %16 {offsets = [0, 0, 16], sizes = [2, 8, 8], strides = [1, 1, 1]} : vector<2x8x96xf32> to vector<2x8x8xf32>
    %20 = vector.extract_strided_slice %16 {offsets = [0, 0, 24], sizes = [2, 8, 8], strides = [1, 1, 1]} : vector<2x8x96xf32> to vector<2x8x8xf32>
    %21 = tpu.concatenate %17, %18, %19, %20 in 0 : vector<2x8x8xf32>, vector<2x8x8xf32>, vector<2x8x8xf32>, vector<2x8x8xf32> -> vector<8x8x8xf32>
    %22 = vector.extract_strided_slice %16 {offsets = [0, 0, 32], sizes = [2, 8, 8], strides = [1, 1, 1]} : vector<2x8x96xf32> to vector<2x8x8xf32>
    %23 = vector.extract_strided_slice %16 {offsets = [0, 0, 40], sizes = [2, 8, 8], strides = [1, 1, 1]} : vector<2x8x96xf32> to vector<2x8x8xf32>
    %24 = vector.extract_strided_slice %16 {offsets = [0, 0, 48], sizes = [2, 8, 8], strides = [1, 1, 1]} : vector<2x8x96xf32> to vector<2x8x8xf32>
    %25 = vector.extract_strided_slice %16 {offsets = [0, 0, 56], sizes = [2, 8, 8], strides = [1, 1, 1]} : vector<2x8x96xf32> to vector<2x8x8xf32>
    %26 = tpu.concatenate %22, %23, %24, %25 in 0 : vector<2x8x8xf32>, vector<2x8x8xf32>, vector<2x8x8xf32>, vector<2x8x8xf32> -> vector<8x8x8xf32>
    %27 = vector.extract_strided_slice %16 {offsets = [0, 0, 64], sizes = [2, 8, 8], strides = [1, 1, 1]} : vector<2x8x96xf32> to vector<2x8x8xf32>
    %28 = vector.extract_strided_slice %16 {offsets = [0, 0, 72], sizes = [2, 8, 8], strides = [1, 1, 1]} : vector<2x8x96xf32> to vector<2x8x8xf32>
    %29 = vector.extract_strided_slice %16 {offsets = [0, 0, 80], sizes = [2, 8, 8], strides = [1, 1, 1]} : vector<2x8x96xf32> to vector<2x8x8xf32>
    %30 = vector.extract_strided_slice %16 {offsets = [0, 0, 88], sizes = [2, 8, 8], strides = [1, 1, 1]} : vector<2x8x96xf32> to vector<2x8x8xf32>
    %31 = tpu.concatenate %27, %28, %29, %30 in 0 : vector<2x8x8xf32>, vector<2x8x8xf32>, vector<2x8x8xf32>, vector<2x8x8xf32> -> vector<8x8x8xf32>
    "tpu.trace_start"() <{level = 10 : i32, message = "nqd,nkd->nqk"}> : () -> ()
    %cst_16 = arith.constant dense<0.000000e+00> : vector<8x8x8xf32>
    %32 = tpu.matmul %21, %26, %cst_16 {dimension_numbers = #tpu.dot_dimension_numbers<[2], [2], [1], [1], [0, 0, 0, 1, 1, 1], [0], [0]>} : vector<8x8x8xf32>, vector<8x8x8xf32>, vector<8x8x8xf32> -> vector<8x8x8xf32>
    "tpu.trace_stop"() : () -> ()
    %cst_17 = arith.constant dense<0xFF800000> : vector<8x8xf32>
    %33 = vector.multi_reduction <maximumf>, %32, %cst_17 [2] : vector<8x8x8xf32> to vector<8x8xf32>
    %34 = vector.shape_cast %33 : vector<8x8xf32> to vector<8x8x1xf32>
    %35 = vector.broadcast %34 : vector<8x8x1xf32> to vector<8x8x8xf32>
    %36 = arith.subf %32, %35 : vector<8x8x8xf32>
    %37 = math.exp %36 : vector<8x8x8xf32>
    %cst_18 = arith.constant dense<0.000000e+00> : vector<8x8xf32>
    %38 = vector.multi_reduction <add>, %37, %cst_18 [2] : vector<8x8x8xf32> to vector<8x8xf32>
    %39 = vector.shape_cast %38 : vector<8x8xf32> to vector<8x8x1xf32>
    %40 = vector.broadcast %39 : vector<8x8x1xf32> to vector<8x8x8xf32>
    %41 = arith.divf %37, %40 : vector<8x8x8xf32>
    "tpu.trace_start"() <{level = 10 : i32, message = "nqk,nkd->nqd"}> : () -> ()
    %cst_19 = arith.constant dense<0.000000e+00> : vector<8x8x8xf32>
    %42 = tpu.matmul %41, %31, %cst_19 {dimension_numbers = #tpu.dot_dimension_numbers<[2], [1], [1], [2], [0, 0, 0, 1, 1, 2], [0], [0]>} : vector<8x8x8xf32>, vector<8x8x8xf32>, vector<8x8x8xf32> -> vector<8x8x8xf32>
    "tpu.trace_stop"() : () -> ()
    %43 = vector.extract_strided_slice %42 {offsets = [0, 0, 0], sizes = [2, 8, 8], strides = [1, 1, 1]} : vector<8x8x8xf32> to vector<2x8x8xf32>
    %44 = vector.extract_strided_slice %42 {offsets = [2, 0, 0], sizes = [2, 8, 8], strides = [1, 1, 1]} : vector<8x8x8xf32> to vector<2x8x8xf32>
    %45 = vector.extract_strided_slice %42 {offsets = [4, 0, 0], sizes = [2, 8, 8], strides = [1, 1, 1]} : vector<8x8x8xf32> to vector<2x8x8xf32>
    %46 = vector.extract_strided_slice %42 {offsets = [6, 0, 0], sizes = [2, 8, 8], strides = [1, 1, 1]} : vector<8x8x8xf32> to vector<2x8x8xf32>
    %47 = tpu.concatenate %43, %44, %45, %46 in 2 : vector<2x8x8xf32>, vector<2x8x8xf32>, vector<2x8x8xf32>, vector<2x8x8xf32> -> vector<2x8x32xf32>
    %48 = vector.shape_cast %47 : vector<2x8x32xf32> to vector<16x32xf32>
    %cst_20 = arith.constant dense<0.000000e+00> : vector<16x32xf32>
    %49 = tpu.matmul %48, %1, %cst_20 {dimension_numbers = #tpu.dot_dimension_numbers<[1], [0], [0], [1], [0, 0, 1, 1], [], []>} : vector<16x32xf32>, vector<32x32xf32>, vector<16x32xf32> -> vector<16x32xf32>
    %50 = vector.broadcast %5 : vector<1x32xf32> to vector<16x32xf32>
    %51 = arith.addf %49, %50 : vector<16x32xf32>
    %52 = arith.addf %12, %51 : vector<16x32xf32>
    %cst_21 = arith.constant dense<0.000000e+00> : vector<16xf32>
    %53 = vector.multi_reduction <add>, %52, %cst_21 [1] : vector<16x32xf32> to vector<16xf32>
    %54 = vector.shape_cast %53 : vector<16xf32> to vector<16x1xf32>
    %cst_22 = arith.constant 3.200000e+01 : f32
    %55 = vector.broadcast %cst_22 : f32 to vector<16x1xf32>
    %56 = arith.divf %54, %55 : vector<16x1xf32>
    %57 = vector.broadcast %56 : vector<16x1xf32> to vector<16x32xf32>
    %58 = arith.subf %52, %57 : vector<16x32xf32>
    %59 = arith.mulf %58, %58 : vector<16x32xf32>
    %cst_23 = arith.constant dense<0.000000e+00> : vector<16xf32>
    %60 = vector.multi_reduction <add>, %59, %cst_23 [1] : vector<16x32xf32> to vector<16xf32>
    %61 = vector.shape_cast %60 : vector<16xf32> to vector<16x1xf32>
    %cst_24 = arith.constant 3.200000e+01 : f32
    %62 = vector.broadcast %cst_24 : f32 to vector<16x1xf32>
    %63 = arith.divf %61, %62 : vector<16x1xf32>
    %cst_25 = arith.constant 9.99999974E-6 : f32
    %64 = vector.broadcast %cst_25 : f32 to vector<16x1xf32>
    %65 = arith.addf %63, %64 : vector<16x1xf32>
    %66 = math.rsqrt %65 : vector<16x1xf32>
    %67 = vector.broadcast %56 : vector<16x1xf32> to vector<16x32xf32>
    %68 = arith.subf %52, %67 : vector<16x32xf32>
    %69 = vector.broadcast %66 : vector<16x1xf32> to vector<16x32xf32>
    %70 = arith.mulf %68, %69 : vector<16x32xf32>
    %71 = vector.broadcast %8 : vector<1x32xf32> to vector<16x32xf32>
    %72 = arith.mulf %70, %71 : vector<16x32xf32>
    %73 = vector.broadcast %9 : vector<1x32xf32> to vector<16x32xf32>
    %74 = arith.addf %72, %73 : vector<16x32xf32>
    %cst_26 = arith.constant dense<0.000000e+00> : vector<16x64xf32>
    %75 = tpu.matmul %74, %2, %cst_26 {dimension_numbers = #tpu.dot_dimension_numbers<[1], [0], [0], [1], [0, 0, 1, 1], [], []>} : vector<16x32xf32>, vector<32x64xf32>, vector<16x64xf32> -> vector<16x64xf32>
    %76 = vector.broadcast %6 : vector<1x64xf32> to vector<16x64xf32>
    %77 = arith.addf %75, %76 : vector<16x64xf32>
    %cst_27 = arith.constant 0.000000e+00 : f32
    %78 = vector.broadcast %cst_27 : f32 to vector<16x64xf32>
    %79 = arith.maximumf %77, %78 : vector<16x64xf32>
    %cst_28 = arith.constant dense<0.000000e+00> : vector<16x32xf32>
    %80 = tpu.matmul %79, %3, %cst_28 {dimension_numbers = #tpu.dot_dimension_numbers<[1], [0], [0], [1], [0, 0, 1, 1], [], []>} : vector<16x64xf32>, vector<64x32xf32>, vector<16x32xf32> -> vector<16x32xf32>
    %81 = vector.broadcast %7 : vector<1x32xf32> to vector<16x32xf32>
    %82 = arith.addf %80, %81 : vector<16x32xf32>
    %83 = arith.addf %74, %82 : vector<16x32xf32>
    %cst_29 = arith.constant dense<0.000000e+00> : vector<16xf32>
    %84 = vector.multi_reduction <add>, %83, %cst_29 [1] : vector<16x32xf32> to vector<16xf32>
    %85 = vector.shape_cast %84 : vector<16xf32> to vector<16x1xf32>
    %cst_30 = arith.constant 3.200000e+01 : f32
    %86 = vector.broadcast %cst_30 : f32 to vector<16x1xf32>
    %87 = arith.divf %85, %86 : vector<16x1xf32>
    %88 = vector.broadcast %87 : vector<16x1xf32> to vector<16x32xf32>
    %89 = arith.subf %83, %88 : vector<16x32xf32>
    %90 = arith.mulf %89, %89 : vector<16x32xf32>
    %cst_31 = arith.constant dense<0.000000e+00> : vector<16xf32>
    %91 = vector.multi_reduction <add>, %90, %cst_31 [1] : vector<16x32xf32> to vector<16xf32>
    %92 = vector.shape_cast %91 : vector<16xf32> to vector<16x1xf32>
    %cst_32 = arith.constant 3.200000e+01 : f32
    %93 = vector.broadcast %cst_32 : f32 to vector<16x1xf32>
    %94 = arith.divf %92, %93 : vector<16x1xf32>
    %cst_33 = arith.constant 9.99999974E-6 : f32
    %95 = vector.broadcast %cst_33 : f32 to vector<16x1xf32>
    %96 = arith.addf %94, %95 : vector<16x1xf32>
    %97 = math.rsqrt %96 : vector<16x1xf32>
    %98 = vector.broadcast %87 : vector<16x1xf32> to vector<16x32xf32>
    %99 = arith.subf %83, %98 : vector<16x32xf32>
    %100 = vector.broadcast %97 : vector<16x1xf32> to vector<16x32xf32>
    %101 = arith.mulf %99, %100 : vector<16x32xf32>
    %102 = vector.broadcast %10 : vector<1x32xf32> to vector<16x32xf32>
    %103 = arith.mulf %101, %102 : vector<16x32xf32>
    %104 = vector.broadcast %11 : vector<1x32xf32> to vector<16x32xf32>
    %105 = arith.addf %103, %104 : vector<16x32xf32>
    %106 = vector.extract_strided_slice %41 {offsets = [0, 0, 0], sizes = [2, 8, 8], strides = [1, 1, 1]} : vector<8x8x8xf32> to vector<2x8x8xf32>
    %cst_34 = arith.constant 0.000000e+00 : f32
    %107 = vector.broadcast %cst_34 : f32 to vector<2x8x8xf32>
    %108 = arith.addf %107, %106 : vector<2x8x8xf32>
    %109 = vector.extract_strided_slice %41 {offsets = [2, 0, 0], sizes = [2, 8, 8], strides = [1, 1, 1]} : vector<8x8x8xf32> to vector<2x8x8xf32>
    %110 = arith.addf %108, %109 : vector<2x8x8xf32>
    %111 = vector.extract_strided_slice %41 {offsets = [4, 0, 0], sizes = [2, 8, 8], strides = [1, 1, 1]} : vector<8x8x8xf32> to vector<2x8x8xf32>
    %112 = arith.addf %110, %111 : vector<2x8x8xf32>
    %113 = vector.extract_strided_slice %41 {offsets = [6, 0, 0], sizes = [2, 8, 8], strides = [1, 1, 1]} : vector<8x8x8xf32> to vector<2x8x8xf32>
    %114 = arith.addf %112, %113 : vector<2x8x8xf32>
    %cst_35 = arith.constant 2.500000e-01 : f32
    %115 = vector.broadcast %cst_35 : f32 to vector<2x8x8xf32>
    %116 = arith.mulf %114, %115 : vector<2x8x8xf32>
    %117 = vector.shape_cast %116 : vector<2x8x8xf32> to vector<16x8xf32>
    %cst_36 = arith.constant 0.000000e+00 : f32
    %118 = vector.broadcast %cst_36 : f32 to vector<16x88xf32>
    %119 = tpu.concatenate %105, %117, %118 in 1 : vector<16x32xf32>, vector<16x8xf32>, vector<16x88xf32> -> vector<16x128xf32>
    %c0_37 = arith.constant 0 : index
    %c0_38 = arith.constant 0 : index
    %120 = vector.load %arg4[%c0_37, %c0_38] : memref<16x128xf32, #tpu.memory_space<vmem>>, vector<16x128xf32>
    tpu.vector_store %arg4[%c0_37, %c0_38], %119 {strides = array<i32>} : memref<16x128xf32, #tpu.memory_space<vmem>>, vector<16x128xf32>,
    return
  }
}

</mosaic_0001>

<llo_original>
// kernel: encoder_layer_forward.1
$region0: #{encoder_layer_forward.1}
  #allocation0 [shape = 'u32[]', space=smem, size = 0x4, offset = 0x4, fixed_abs, tag = 'smem constant byte address 0x4 - core index']
  #allocation1 [shape = 'u32[144,128]{1,0:T(1,128)}', space=vmem, size = 0x12000, scoped, tag = 'internal scratch']
  %s0 = inlined_call_operand.hbm [shape: f32[16,32], index: 0, kind: input, shape index: {}]
  %s1 = inlined_call_operand.vmem [shape: f32[32,384], index: 1, kind: input, shape index: {}]
  %s2 = inlined_call_operand.vmem [shape: f32[64,32], index: 2, kind: input, shape index: {}]
  %s3 = inlined_call_operand.vmem [shape: f32[8,128], index: 3, kind: input, shape index: {}]
  %s4 = inlined_call_operand.vmem [shape: f32[16,128], index: 4, kind: output, shape index: {}]
  %s5 = sld [smem:[#allocation0]]
  $region30: #{encoder_layer_forward.1} parent=0
    _
  %s7 = ssub.s32 1, %s5
  %s8 = scalar_select 0, %s7, %s5
  $region1: #{encoder_layer_forward.1} parent=0
    #allocation2 [shape = 'u8[8192]{0}', space=vmem, size = 0x2000, scoped, tag = 'input window, operand 0, single buffered']
    #allocation3 [shape = 's32[1]{0}', space=sflag, size = 0x4, scoped, tag = 'scoped memory for encoder_layer_forward.1']
    %9 = vsyncpa [#allocation3], 0
    // Predicated region
    $region2: #{encoder_layer_forward.1} parent=1 // pred_check
      _
    $region3: #{encoder_layer_forward.1} parent=1 // pred_check_branch
      %11 = sbr.rel (0) target = $region5
    $region4: #{encoder_layer_forward.1} parent=1 // pred_region
      %s13 = ssub.s32 256, 256
      %14 = vsyncadd [#allocation3], %s13
      %s15 = sshll.u32 [#allocation2], 4
      %s16 = int_to_ptr.vmem [resolvable:$true] %s15
      %21 = dma.hbm_to_vmem [thread:$0]  %s0, 256, %s16, [#allocation3], 128, 128, 8
    $region5: #{encoder_layer_forward.1} parent=1 // pred_fallthru
      _
    // Predicated region
    $region6: #{encoder_layer_forward.1} parent=1 // pred_check
      _
    $region7: #{encoder_layer_forward.1} parent=1 // pred_check_branch
      %23 = sbr.rel (0) target = $region9
    $region8: #{encoder_layer_forward.1} parent=1 // pred_region
      _
    $region9: #{encoder_layer_forward.1} parent=1 // pred_fallthru
      _
    // Predicated region
    $region10: #{encoder_layer_forward.1} parent=1 // pred_check
      _
    $region11: #{encoder_layer_forward.1} parent=1 // pred_check_branch
      %25 = sbr.rel (0) target = $region13
    $region12: #{encoder_layer_forward.1} parent=1 // pred_region
      _
    $region13: #{encoder_layer_forward.1} parent=1 // pred_fallthru
      _
    // Predicated region
    $region14: #{encoder_layer_forward.1} parent=1 // pred_check
      _
    $region15: #{encoder_layer_forward.1} parent=1 // pred_check_branch
      %27 = sbr.rel (0) target = $region17
    $region16: #{encoder_layer_forward.1} parent=1 // pred_region
      _
    $region17: #{encoder_layer_forward.1} parent=1 // pred_fallthru
      _
    // Predicated region
    $region18: #{encoder_layer_forward.1} parent=1 // pred_check
      _
    $region19: #{encoder_layer_forward.1} parent=1 // pred_check_branch
      %29 = sbr.rel (0) target = $region21
    $region20: #{encoder_layer_forward.1} parent=1 // pred_region
      %30 = dma.done [#allocation3], 256
    $region21: #{encoder_layer_forward.1} parent=1 // pred_fallthru
      _
    %v31 = vld [vmem:[%s1] sm:$0xff]
    %v32 = vld [vmem:[%s1 + $0x18] sm:$0xff]
    %v33 = vld [vmem:[%s1 + $0x30] sm:$0xff]
    %v34 = vld [vmem:[%s1 + $0x48] sm:$0xff]
    %v35 = vld [vmem:[%s1 + $0x8] sm:$0xff]
    %v36 = vld [vmem:[%s1 + $0x20] sm:$0xff]
    %v37 = vld [vmem:[%s1 + $0x38] sm:$0xff]
    %v38 = vld [vmem:[%s1 + $0x50] sm:$0xff]
    %v39 = vld [vmem:[%s1 + $0x10] sm:$0xff]
    %v40 = vld [vmem:[%s1 + $0x28] sm:$0xff]
    %v41 = vld [vmem:[%s1 + $0x40] sm:$0xff]
    %v42 = vld [vmem:[%s1 + $0x58] sm:$0xff]
    %v43 = vld [vmem:[%s2] sm:$0xff]
    %v44 = vld [vmem:[%s2 + $0x8] sm:$0xff]
    %v45 = vld [vmem:[%s2 + $0x10] sm:$0xff]
    %v46 = vld [vmem:[%s2 + $0x18] sm:$0xff]
    %v47 = vld [vmem:[%s2 + $0x20] sm:$0xff]
    %v48 = vld [vmem:[%s2 + $0x28] sm:$0xff]
    %v49 = vld [vmem:[%s2 + $0x30] sm:$0xff]
    %v50 = vld [vmem:[%s2 + $0x38] sm:$0xff]
    %v51 = vld [vmem:[%s3] sm:$0x1]
    %v52 = vld [vmem:[%s3 + $0x1] sm:$0x1]
    %v53 = vld [vmem:[%s3 + $0x2] sm:$0x1]
    %v54 = vld [vmem:[%s3 + $0x3] sm:$0x1]
    %v55 = vld [vmem:[%s3 + $0x4] sm:$0x1]
    %v56 = vld [vmem:[%s3 + $0x5] sm:$0x1]
    %v57 = vld [vmem:[%s3 + $0x6] sm:$0x1]
    %v58 = vld [vmem:[%s3 + $0x7] sm:$0x1]
    %v59 = vld [vmem:[#allocation2] sm:$0xff]
    %v60 = vld [vmem:[#allocation2 + $0x8] sm:$0xff]
    %v61 = vlaneseq
    %v62 = vshrl.u32 %v61, 7
    %v63 = vsub.s32 0, %v62
    %v64 = vrot.slane %v51, %v63
    %vm65 = vcmask 261120
    %v67 = vsel %vm65, %v59, 0
    %v70 = vsel %vm65, %v60, 0
    %72 = vmatprep.subr.mxu0 0.0
    %73 = vmatpush1.msra.mxu0 %v31
    %74 = vmatprep.subr.mxu0 0.0
    %75 = vmatpush1.msra.mxu0 %v32
    %76 = vmatprep.subr.mxu0 0.0
    %77 = vmatpush1.msra.mxu0 %v33
    %78 = vmatprep.subr.mxu0 0.0
    %79 = vmatpush1.msra.mxu0 %v34
    %80 = vmatprep.subr.mxu0 0.0
    %81 = vmatpush1.msra.mxu0 0.0
    %82 = vmatprep.subr.mxu0 0.0
    %83 = vmatpush1.msra.mxu0 0.0
    %84 = vmatprep.subr.mxu0 0.0
    %85 = vmatpush1.msra.mxu0 0.0
    %86 = vmatprep.subr.mxu0 0.0
    %87 = vmatpush1.msra.mxu0 0.0
    %88 = vmatprep.subr.mxu0 0.0
    %89 = vmatpush1.msra.mxu0 0.0
    %90 = vmatprep.subr.mxu0 0.0
    %91 = vmatpush1.msra.mxu0 0.0
    %92 = vmatprep.subr.mxu0 0.0
    %93 = vmatpush1.msra.mxu0 0.0
    %94 = vmatprep.subr.mxu0 0.0
    %95 = vmatpush1.msra.mxu0 0.0
    %96 = vmatprep.subr.mxu0 0.0
    %97 = vmatpush1.msra.mxu0 0.0
    %98 = vmatprep.subr.mxu0 0.0
    %99 = vmatpush1.msra.mxu0 0.0
    %100 = vmatprep.subr.mxu0 0.0
    %101 = vmatpush1.msra.mxu0 0.0
    %102 = vmatprep.subr.mxu0 0.0
    %103 = vmatpush1.msra.mxu0 0.0
    %104 = vmatprep.subr.mxu0 0.0
    %105 = vmatpush1.msra.mxu0 0.0
    %106 = vmatprep.subr.mxu0 0.0
    %107 = vmatpush1.msra.mxu0 0.0
    %108 = vmatprep.subr.mxu0 0.0
    %109 = vmatpush1.msra.mxu0 0.0
    %110 = vmatprep.subr.mxu0 0.0
    %111 = vmatpush1.msra.mxu0 0.0
    %112 = vmatprep.subr.mxu0 0.0
    %113 = vmatpush1.msra.mxu0 0.0
    %114 = vmatprep.subr.mxu0 0.0
    %115 = vmatpush1.msra.mxu0 0.0
    %116 = vmatprep.subr.mxu0 0.0
    %117 = vmatpush1.msra.mxu0 0.0
    %118 = vmatprep.subr.mxu0 0.0
    %119 = vmatpush1.msra.mxu0 0.0
    %120 = vmatprep.subr.mxu0 0.0
    %121 = vmatpush1.msra.mxu0 0.0
    %122 = vmatprep.subr.mxu0 0.0
    %123 = vmatpush1.msra.mxu0 0.0
    %124 = vmatprep.subr.mxu0 0.0
    %125 = vmatpush1.msra.mxu0 0.0
    %126 = vmatprep.subr.mxu0 0.0
    %127 = vmatpush1.msra.mxu0 0.0
    %128 = vmatprep.subr.mxu0 0.0
    %129 = vmatpush1.msra.mxu0 0.0
    %130 = vmatprep.subr.mxu0 0.0
    %131 = vmatpush1.msra.mxu0 0.0
    %132 = vmatprep.subr.mxu0 0.0
    %133 = vmatpush1.msra.mxu0 0.0
    %134 = vmatprep.subr.mxu0 0.0
    %135 = vmatpush1.msra.mxu0 0.0
    %136 = vmatprep.mubr.f32.mxu0 0.0
    %137 = vmatmul.mubr.f32.gmra.mrb[0].mxu0 %v67
    %v138 = vpop.f32.mrb[0].mxu0
    %v139 = vadd.f32 %v64, %v138
    %v140 = vpop.f32.mrb[0].mxu0
    %141 = vmatprep.mubr.f32.mxu0 0.0
    %142 = vmatmul.mubr.f32.gmra.mrb[0].mxu0 %v70
    %v143 = vpop.f32.mrb[0].mxu0
    %v144 = vadd.f32 %v64, %v143
    %v145 = vpop.f32.mrb[0].mxu0
    %146 = vdwg.mxu0
    %149 = vrot.lane.b32.xlu0 %v139, 120
    %v150 = vpop.permute.xlu0 %149
    %151 = vrot.lane.b32.xlu0 %v144, 120
    %v152 = vpop.permute.xlu0 %151
    %153 = vrot.lane.b32.xlu0 %v139, 112
    %v154 = vpop.permute.xlu0 %153
    %155 = vrot.lane.b32.xlu0 %v144, 112
    %v156 = vpop.permute.xlu0 %155
    %157 = vrot.lane.b32.xlu0 %v139, 104
    %v158 = vpop.permute.xlu0 %157
    %159 = vrot.lane.b32.xlu0 %v144, 104
    %v160 = vpop.permute.xlu0 %159
    %161 = vrot.lane.b32.xlu0 %v139, 96
    %v162 = vpop.permute.xlu0 %161
    %vm163 = vcmask 64512
    %v164 = vsel %vm163, %v139, 0
    %v166 = vsel %vm163, %v162, 0
    %168 = vmatprep.subr.mxu0 0.0
    %169 = vmatpush1.xpose.msra.mxu0 %v166
    %170 = vmatprep.subr.mxu0 0.0
    %171 = vmatpush1.xpose.msra.mxu0 0.0
    %172 = vmatprep.subr.mxu0 0.0
    %173 = vmatpush1.xpose.msra.mxu0 0.0
    %174 = vmatprep.subr.mxu0 0.0
    %175 = vmatpush1.xpose.msra.mxu0 0.0
    %176 = vmatprep.subr.mxu0 0.0
    %177 = vmatpush1.xpose.msra.mxu0 0.0
    %178 = vmatprep.subr.mxu0 0.0
    %179 = vmatpush1.xpose.msra.mxu0 0.0
    %180 = vmatprep.subr.mxu0 0.0
    %181 = vmatpush1.xpose.msra.mxu0 0.0
    %182 = vmatprep.subr.mxu0 0.0
    %183 = vmatpush1.xpose.msra.mxu0 0.0
    %184 = vmatprep.subr.mxu0 0.0
    %185 = vmatpush1.xpose.msra.mxu0 0.0
    %186 = vmatprep.subr.mxu0 0.0
    %187 = vmatpush1.xpose.msra.mxu0 0.0
    %188 = vmatprep.subr.mxu0 0.0
    %189 = vmatpush1.xpose.msra.mxu0 0.0
    %190 = vmatprep.subr.mxu0 0.0
    %191 = vmatpush1.xpose.msra.mxu0 0.0
    %192 = vmatprep.subr.mxu0 0.0
    %193 = vmatpush1.xpose.msra.mxu0 0.0
    %194 = vmatprep.subr.mxu0 0.0
    %195 = vmatpush1.xpose.msra.mxu0 0.0
    %196 = vmatprep.subr.mxu0 0.0
    %197 = vmatpush1.xpose.msra.mxu0 0.0
    %198 = vmatprep.subr.mxu0 0.0
    %199 = vmatpush1.xpose.msra.mxu0 0.0
    %200 = vmatprep.subr.mxu0 0.0
    %201 = vmatpush1.xpose.msra.mxu0 0.0
    %202 = vmatprep.subr.mxu0 0.0
    %203 = vmatpush1.xpose.msra.mxu0 0.0
    %204 = vmatprep.subr.mxu0 0.0
    %205 = vmatpush1.xpose.msra.mxu0 0.0
    %206 = vmatprep.subr.mxu0 0.0
    %207 = vmatpush1.xpose.msra.mxu0 0.0
    %208 = vmatprep.subr.mxu0 0.0
    %209 = vmatpush1.xpose.msra.mxu0 0.0
    %210 = vmatprep.subr.mxu0 0.0
    %211 = vmatpush1.xpose.msra.mxu0 0.0
    %212 = vmatprep.subr.mxu0 0.0
    %213 = vmatpush1.xpose.msra.mxu0 0.0
    %214 = vmatprep.subr.mxu0 0.0
    %215 = vmatpush1.xpose.msra.mxu0 0.0
    %216 = vmatprep.subr.mxu0 0.0
    %217 = vmatpush1.xpose.msra.mxu0 0.0
    %218 = vmatprep.subr.mxu0 0.0
    %219 = vmatpush1.xpose.msra.mxu0 0.0
    %220 = vmatprep.subr.mxu0 0.0
    %221 = vmatpush1.xpose.msra.mxu0 0.0
    %222 = vmatprep.subr.mxu0 0.0
    %223 = vmatpush1.xpose.msra.mxu0 0.0
    %224 = vmatprep.subr.mxu0 0.0
    %225 = vmatpush1.xpose.msra.mxu0 0.0
    %226 = vmatprep.subr.mxu0 0.0
    %227 = vmatpush1.xpose.msra.mxu0 0.0
    %228 = vmatprep.subr.mxu0 0.0
    %229 = vmatpush1.xpose.msra.mxu0 0.0
    %230 = vmatprep.subr.mxu0 0.0
    %231 = vmatpush1.xpose.msra.mxu0 0.0
    %232 = vmatprep.mubr.f32.mxu0 0.0
    %233 = vmatmul.mubr.f32.gmra.mrb[0].mxu0 %v164
    %v234 = vpop.f32.mrb[0].mxu0
    %v235 = vadd.f32 0.0, %v234
    %v236 = vpop.f32.mrb[0].mxu0
    %237 = vdwg.mxu0
    %238 = vrot.lane.b32.xlu0 %v144, 96
    %v239 = vpop.permute.xlu0 %238
    %v240 = vsel %vm163, %v144, 0
    %v242 = vsel %vm163, %v239, 0
    %244 = vmatprep.subr.mxu0 0.0
    %245 = vmatpush1.xpose.msra.mxu0 %v242
    %246 = vmatprep.subr.mxu0 0.0
    %247 = vmatpush1.xpose.msra.mxu0 0.0
    %248 = vmatprep.subr.mxu0 0.0
    %249 = vmatpush1.xpose.msra.mxu0 0.0
    %250 = vmatprep.subr.mxu0 0.0
    %251 = vmatpush1.xpose.msra.mxu0 0.0
    %252 = vmatprep.subr.mxu0 0.0
    %253 = vmatpush1.xpose.msra.mxu0 0.0
    %254 = vmatprep.subr.mxu0 0.0
    %255 = vmatpush1.xpose.msra.mxu0 0.0
    %256 = vmatprep.subr.mxu0 0.0
    %257 = vmatpush1.xpose.msra.mxu0 0.0
    %258 = vmatprep.subr.mxu0 0.0
    %259 = vmatpush1.xpose.msra.mxu0 0.0
    %260 = vmatprep.subr.mxu0 0.0
    %261 = vmatpush1.xpose.msra.mxu0 0.0
    %262 = vmatprep.subr.mxu0 0.0
    %263 = vmatpush1.xpose.msra.mxu0 0.0
    %264 = vmatprep.subr.mxu0 0.0
    %265 = vmatpush1.xpose.msra.mxu0 0.0
    %266 = vmatprep.subr.mxu0 0.0
    %267 = vmatpush1.xpose.msra.mxu0 0.0
    %268 = vmatprep.subr.mxu0 0.0
    %269 = vmatpush1.xpose.msra.mxu0 0.0
    %270 = vmatprep.subr.mxu0 0.0
    %271 = vmatpush1.xpose.msra.mxu0 0.0
    %272 = vmatprep.subr.mxu0 0.0
    %273 = vmatpush1.xpose.msra.mxu0 0.0
    %274 = vmatprep.subr.mxu0 0.0
    %275 = vmatpush1.xpose.msra.mxu0 0.0
    %276 = vmatprep.subr.mxu0 0.0
    %277 = vmatpush1.xpose.msra.mxu0 0.0
    %278 = vmatprep.subr.mxu0 0.0
    %279 = vmatpush1.xpose.msra.mxu0 0.0
    %280 = vmatprep.subr.mxu0 0.0
    %281 = vmatpush1.xpose.msra.mxu0 0.0
    %282 = vmatprep.subr.mxu0 0.0
    %283 = vmatpush1.xpose.msra.mxu0 0.0
    %284 = vmatprep.subr.mxu0 0.0
    %285 = vmatpush1.xpose.msra.mxu0 0.0
    %286 = vmatprep.subr.mxu0 0.0
    %287 = vmatpush1.xpose.msra.mxu0 0.0
    %288 = vmatprep.subr.mxu0 0.0
    %289 = vmatpush1.xpose.msra.mxu0 0.0
    %290 = vmatprep.subr.mxu0 0.0
    %291 = vmatpush1.xpose.msra.mxu0 0.0
    %292 = vmatprep.subr.mxu0 0.0
    %293 = vmatpush1.xpose.msra.mxu0 0.0
    %294 = vmatprep.subr.mxu0 0.0
    %295 = vmatpush1.xpose.msra.mxu0 0.0
    %296 = vmatprep.subr.mxu0 0.0
    %297 = vmatpush1.xpose.msra.mxu0 0.0
    %298 = vmatprep.subr.mxu0 0.0
    %299 = vmatpush1.xpose.msra.mxu0 0.0
    %300 = vmatprep.subr.mxu0 0.0
    %301 = vmatpush1.xpose.msra.mxu0 0.0
    %302 = vmatprep.subr.mxu0 0.0
    %303 = vmatpush1.xpose.msra.mxu0 0.0
    %304 = vmatprep.subr.mxu0 0.0
    %305 = vmatpush1.xpose.msra.mxu0 0.0
    %306 = vmatprep.subr.mxu0 0.0
    %307 = vmatpush1.xpose.msra.mxu0 0.0
    %308 = vmatprep.mubr.f32.mxu0 0.0
    %309 = vmatmul.mubr.f32.gmra.mrb[0].mxu0 %v240
    %v310 = vpop.f32.mrb[0].mxu0
    %v311 = vadd.f32 0.0, %v310
    %v312 = vpop.f32.mrb[0].mxu0
    %313 = vdwg.mxu0
    %314 = vrot.lane.b32.xlu0 %v150, 96
    %v315 = vpop.permute.xlu0 %314
    %v316 = vsel %vm163, %v150, 0
    %v318 = vsel %vm163, %v315, 0
    %320 = vmatprep.subr.mxu0 0.0
    %321 = vmatpush1.xpose.msra.mxu0 %v318
    %322 = vmatprep.subr.mxu0 0.0
    %323 = vmatpush1.xpose.msra.mxu0 0.0
    %324 = vmatprep.subr.mxu0 0.0
    %325 = vmatpush1.xpose.msra.mxu0 0.0
    %326 = vmatprep.subr.mxu0 0.0
    %327 = vmatpush1.xpose.msra.mxu0 0.0
    %328 = vmatprep.subr.mxu0 0.0
    %329 = vmatpush1.xpose.msra.mxu0 0.0
    %330 = vmatprep.subr.mxu0 0.0
    %331 = vmatpush1.xpose.msra.mxu0 0.0
    %332 = vmatprep.subr.mxu0 0.0
    %333 = vmatpush1.xpose.msra.mxu0 0.0
    %334 = vmatprep.subr.mxu0 0.0
    %335 = vmatpush1.xpose.msra.mxu0 0.0
    %336 = vmatprep.subr.mxu0 0.0
    %337 = vmatpush1.xpose.msra.mxu0 0.0
    %338 = vmatprep.subr.mxu0 0.0
    %339 = vmatpush1.xpose.msra.mxu0 0.0
    %340 = vmatprep.subr.mxu0 0.0
    %341 = vmatpush1.xpose.msra.mxu0 0.0
    %342 = vmatprep.subr.mxu0 0.0
    %343 = vmatpush1.xpose.msra.mxu0 0.0
    %344 = vmatprep.subr.mxu0 0.0
    %345 = vmatpush1.xpose.msra.mxu0 0.0
    %346 = vmatprep.subr.mxu0 0.0
    %347 = vmatpush1.xpose.msra.mxu0 0.0
    %348 = vmatprep.subr.mxu0 0.0
    %349 = vmatpush1.xpose.msra.mxu0 0.0
    %350 = vmatprep.subr.mxu0 0.0
    %351 = vmatpush1.xpose.msra.mxu0 0.0
    %352 = vmatprep.subr.mxu0 0.0
    %353 = vmatpush1.xpose.msra.mxu0 0.0
    %354 = vmatprep.subr.mxu0 0.0
    %355 = vmatpush1.xpose.msra.mxu0 0.0
    %356 = vmatprep.subr.mxu0 0.0
    %357 = vmatpush1.xpose.msra.mxu0 0.0
    %358 = vmatprep.subr.mxu0 0.0
    %359 = vmatpush1.xpose.msra.mxu0 0.0
    %360 = vmatprep.subr.mxu0 0.0
    %361 = vmatpush1.xpose.msra.mxu0 0.0
    %362 = vmatprep.subr.mxu0 0.0
    %363 = vmatpush1.xpose.msra.mxu0 0.0
    %364 = vmatprep.subr.mxu0 0.0
    %365 = vmatpush1.xpose.msra.mxu0 0.0
    %366 = vmatprep.subr.mxu0 0.0
    %367 = vmatpush1.xpose.msra.mxu0 0.0
    %368 = vmatprep.subr.mxu0 0.0
    %369 = vmatpush1.xpose.msra.mxu0 0.0
    %370 = vmatprep.subr.mxu0 0.0
    %371 = vmatpush1.xpose.msra.mxu0 0.0
    %372 = vmatprep.subr.mxu0 0.0
    %373 = vmatpush1.xpose.msra.mxu0 0.0
    %374 = vmatprep.subr.mxu0 0.0
    %375 = vmatpush1.xpose.msra.mxu0 0.0
    %376 = vmatprep.subr.mxu0 0.0
    %377 = vmatpush1.xpose.msra.mxu0 0.0
    %378 = vmatprep.subr.mxu0 0.0
    %379 = vmatpush1.xpose.msra.mxu0 0.0
    %380 = vmatprep.subr.mxu0 0.0
    %381 = vmatpush1.xpose.msra.mxu0 0.0
    %382 = vmatprep.subr.mxu0 0.0
    %383 = vmatpush1.xpose.msra.mxu0 0.0
    %384 = vmatprep.mubr.f32.mxu0 0.0
    %385 = vmatmul.mubr.f32.gmra.mrb[0].mxu0 %v316
    %v386 = vpop.f32.mrb[0].mxu0
    %v387 = vadd.f32 0.0, %v386
    %v388 = vpop.f32.mrb[0].mxu0
    %389 = vdwg.mxu0
    %390 = vrot.lane.b32.xlu0 %v152, 96
    %v391 = vpop.permute.xlu0 %390
    %v392 = vsel %vm163, %v152, 0
    %v394 = vsel %vm163, %v391, 0
    %396 = vmatprep.subr.mxu0 0.0
    %397 = vmatpush1.xpose.msra.mxu0 %v394
    %398 = vmatprep.subr.mxu0 0.0
    %399 = vmatpush1.xpose.msra.mxu0 0.0
    %400 = vmatprep.subr.mxu0 0.0
    %401 = vmatpush1.xpose.msra.mxu0 0.0
    %402 = vmatprep.subr.mxu0 0.0
    %403 = vmatpush1.xpose.msra.mxu0 0.0
    %404 = vmatprep.subr.mxu0 0.0
    %405 = vmatpush1.xpose.msra.mxu0 0.0
    %406 = vmatprep.subr.mxu0 0.0
    %407 = vmatpush1.xpose.msra.mxu0 0.0
    %408 = vmatprep.subr.mxu0 0.0
    %409 = vmatpush1.xpose.msra.mxu0 0.0
    %410 = vmatprep.subr.mxu0 0.0
    %411 = vmatpush1.xpose.msra.mxu0 0.0
    %412 = vmatprep.subr.mxu0 0.0
    %413 = vmatpush1.xpose.msra.mxu0 0.0
    %414 = vmatprep.subr.mxu0 0.0
    %415 = vmatpush1.xpose.msra.mxu0 0.0
    %416 = vmatprep.subr.mxu0 0.0
    %417 = vmatpush1.xpose.msra.mxu0 0.0
    %418 = vmatprep.subr.mxu0 0.0
    %419 = vmatpush1.xpose.msra.mxu0 0.0
    %420 = vmatprep.subr.mxu0 0.0
    %421 = vmatpush1.xpose.msra.mxu0 0.0
    %422 = vmatprep.subr.mxu0 0.0
    %423 = vmatpush1.xpose.msra.mxu0 0.0
    %424 = vmatprep.subr.mxu0 0.0
    %425 = vmatpush1.xpose.msra.mxu0 0.0
    %426 = vmatprep.subr.mxu0 0.0
    %427 = vmatpush1.xpose.msra.mxu0 0.0
    %428 = vmatprep.subr.mxu0 0.0
    %429 = vmatpush1.xpose.msra.mxu0 0.0
    %430 = vmatprep.subr.mxu0 0.0
    %431 = vmatpush1.xpose.msra.mxu0 0.0
    %432 = vmatprep.subr.mxu0 0.0
    %433 = vmatpush1.xpose.msra.mxu0 0.0
    %434 = vmatprep.subr.mxu0 0.0
    %435 = vmatpush1.xpose.msra.mxu0 0.0
    %436 = vmatprep.subr.mxu0 0.0
    %437 = vmatpush1.xpose.msra.mxu0 0.0
    %438 = vmatprep.subr.mxu0 0.0
    %439 = vmatpush1.xpose.msra.mxu0 0.0
    %440 = vmatprep.subr.mxu0 0.0
    %441 = vmatpush1.xpose.msra.mxu0 0.0
    %442 = vmatprep.subr.mxu0 0.0
    %443 = vmatpush1.xpose.msra.mxu0 0.0
    %444 = vmatprep.subr.mxu0 0.0
    %445 = vmatpush1.xpose.msra.mxu0 0.0
    %446 = vmatprep.subr.mxu0 0.0
    %447 = vmatpush1.xpose.msra.mxu0 0.0
    %448 = vmatprep.subr.mxu0 0.0
    %449 = vmatpush1.xpose.msra.mxu0 0.0
    %450 = vmatprep.subr.mxu0 0.0
    %451 = vmatpush1.xpose.msra.mxu0 0.0
    %452 = vmatprep.subr.mxu0 0.0
    %453 = vmatpush1.xpose.msra.mxu0 0.0
    %454 = vmatprep.subr.mxu0 0.0
    %455 = vmatpush1.xpose.msra.mxu0 0.0
    %456 = vmatprep.subr.mxu0 0.0
    %457 = vmatpush1.xpose.msra.mxu0 0.0
    %458 = vmatprep.subr.mxu0 0.0
    %459 = vmatpush1.xpose.msra.mxu0 0.0
    %460 = vmatprep.mubr.f32.mxu0 0.0
    %461 = vmatmul.mubr.f32.gmra.mrb[0].mxu0 %v392
    %v462 = vpop.f32.mrb[0].mxu0
    %v463 = vadd.f32 0.0, %v462
    %v464 = vpop.f32.mrb[0].mxu0
    %465 = vdwg.mxu0
    %466 = vrot.lane.b32.xlu0 %v154, 96
    %v467 = vpop.permute.xlu0 %466
    %v468 = vsel %vm163, %v154, 0
    %v470 = vsel %vm163, %v467, 0
    %472 = vmatprep.subr.mxu0 0.0
    %473 = vmatpush1.xpose.msra.mxu0 %v470
    %474 = vmatprep.subr.mxu0 0.0
    %475 = vmatpush1.xpose.msra.mxu0 0.0
    %476 = vmatprep.subr.mxu0 0.0
    %477 = vmatpush1.xpose.msra.mxu0 0.0
    %478 = vmatprep.subr.mxu0 0.0
    %479 = vmatpush1.xpose.msra.mxu0 0.0
    %480 = vmatprep.subr.mxu0 0.0
    %481 = vmatpush1.xpose.msra.mxu0 0.0
    %482 = vmatprep.subr.mxu0 0.0
    %483 = vmatpush1.xpose.msra.mxu0 0.0
    %484 = vmatprep.subr.mxu0 0.0
    %485 = vmatpush1.xpose.msra.mxu0 0.0
    %486 = vmatprep.subr.mxu0 0.0
    %487 = vmatpush1.xpose.msra.mxu0 0.0
    %488 = vmatprep.subr.mxu0 0.0
    %489 = vmatpush1.xpose.msra.mxu0 0.0
    %490 = vmatprep.subr.mxu0 0.0
    %491 = vmatpush1.xpose.msra.mxu0 0.0
    %492 = vmatprep.subr.mxu0 0.0
    %493 = vmatpush1.xpose.msra.mxu0 0.0
    %494 = vmatprep.subr.mxu0 0.0
    %495 = vmatpush1.xpose.msra.mxu0 0.0
    %496 = vmatprep.subr.mxu0 0.0
    %497 = vmatpush1.xpose.msra.mxu0 0.0
    %498 = vmatprep.subr.mxu0 0.0
    %499 = vmatpush1.xpose.msra.mxu0 0.0
    %500 = vmatprep.subr.mxu0 0.0
    %501 = vmatpush1.xpose.msra.mxu0 0.0
    %502 = vmatprep.subr.mxu0 0.0
    %503 = vmatpush1.xpose.msra.mxu0 0.0
    %504 = vmatprep.subr.mxu0 0.0
    %505 = vmatpush1.xpose.msra.mxu0 0.0
    %506 = vmatprep.subr.mxu0 0.0
    %507 = vmatpush1.xpose.msra.mxu0 0.0
    %508 = vmatprep.subr.mxu0 0.0
    %509 = vmatpush1.xpose.msra.mxu0 0.0
    %510 = vmatprep.subr.mxu0 0.0
    %511 = vmatpush1.xpose.msra.mxu0 0.0
    %512 = vmatprep.subr.mxu0 0.0
    %513 = vmatpush1.xpose.msra.mxu0 0.0
    %514 = vmatprep.subr.mxu0 0.0
    %515 = vmatpush1.xpose.msra.mxu0 0.0
    %516 = vmatprep.subr.mxu0 0.0
    %517 = vmatpush1.xpose.msra.mxu0 0.0
    %518 = vmatprep.subr.mxu0 0.0
    %519 = vmatpush1.xpose.msra.mxu0 0.0
    %520 = vmatprep.subr.mxu0 0.0
    %521 = vmatpush1.xpose.msra.mxu0 0.0
    %522 = vmatprep.subr.mxu0 0.0
    %523 = vmatpush1.xpose.msra.mxu0 0.0
    %524 = vmatprep.subr.mxu0 0.0
    %525 = vmatpush1.xpose.msra.mxu0 0.0
    %526 = vmatprep.subr.mxu0 0.0
    %527 = vmatpush1.xpose.msra.mxu0 0.0
    %528 = vmatprep.subr.mxu0 0.0
    %529 = vmatpush1.xpose.msra.mxu0 0.0
    %530 = vmatprep.subr.mxu0 0.0
    %531 = vmatpush1.xpose.msra.mxu0 0.0
    %532 = vmatprep.subr.mxu0 0.0
    %533 = vmatpush1.xpose.msra.mxu0 0.0
    %534 = vmatprep.subr.mxu0 0.0
    %535 = vmatpush1.xpose.msra.mxu0 0.0
    %536 = vmatprep.mubr.f32.mxu0 0.0
    %537 = vmatmul.mubr.f32.gmra.mrb[0].mxu0 %v468
    %v538 = vpop.f32.mrb[0].mxu0
    %v539 = vadd.f32 0.0, %v538
    %v540 = vpop.f32.mrb[0].mxu0
    %541 = vdwg.mxu0
    %542 = vrot.lane.b32.xlu0 %v156, 96
    %v543 = vpop.permute.xlu0 %542
    %v544 = vsel %vm163, %v156, 0
    %v546 = vsel %vm163, %v543, 0
    %548 = vmatprep.subr.mxu0 0.0
    %549 = vmatpush1.xpose.msra.mxu0 %v546
    %550 = vmatprep.subr.mxu0 0.0
    %551 = vmatpush1.xpose.msra.mxu0 0.0
    %552 = vmatprep.subr.mxu0 0.0
    %553 = vmatpush1.xpose.msra.mxu0 0.0
    %554 = vmatprep.subr.mxu0 0.0
    %555 = vmatpush1.xpose.msra.mxu0 0.0
    %556 = vmatprep.subr.mxu0 0.0
    %557 = vmatpush1.xpose.msra.mxu0 0.0
    %558 = vmatprep.subr.mxu0 0.0
    %559 = vmatpush1.xpose.msra.mxu0 0.0
    %560 = vmatprep.subr.mxu0 0.0
    %561 = vmatpush1.xpose.msra.mxu0 0.0
    %562 = vmatprep.subr.mxu0 0.0
    %563 = vmatpush1.xpose.msra.mxu0 0.0
    %564 = vmatprep.subr.mxu0 0.0
    %565 = vmatpush1.xpose.msra.mxu0 0.0
    %566 = vmatprep.subr.mxu0 0.0
    %567 = vmatpush1.xpose.msra.mxu0 0.0
    %568 = vmatprep.subr.mxu0 0.0
    %569 = vmatpush1.xpose.msra.mxu0 0.0
    %570 = vmatprep.subr.mxu0 0.0
    %571 = vmatpush1.xpose.msra.mxu0 0.0
    %572 = vmatprep.subr.mxu0 0.0
    %573 = vmatpush1.xpose.msra.mxu0 0.0
    %574 = vmatprep.subr.mxu0 0.0
    %575 = vmatpush1.xpose.msra.mxu0 0.0
    %576 = vmatprep.subr.mxu0 0.0
    %577 = vmatpush1.xpose.msra.mxu0 0.0
    %578 = vmatprep.subr.mxu0 0.0
    %579 = vmatpush1.xpose.msra.mxu0 0.0
    %580 = vmatprep.subr.mxu0 0.0
    %581 = vmatpush1.xpose.msra.mxu0 0.0
    %582 = vmatprep.subr.mxu0 0.0
    %583 = vmatpush1.xpose.msra.mxu0 0.0
    %584 = vmatprep.subr.mxu0 0.0
    %585 = vmatpush1.xpose.msra.mxu0 0.0
    %586 = vmatprep.subr.mxu0 0.0
    %587 = vmatpush1.xpose.msra.mxu0 0.0
    %588 = vmatprep.subr.mxu0 0.0
    %589 = vmatpush1.xpose.msra.mxu0 0.0
    %590 = vmatprep.subr.mxu0 0.0
    %591 = vmatpush1.xpose.msra.mxu0 0.0
    %592 = vmatprep.subr.mxu0 0.0
    %593 = vmatpush1.xpose.msra.mxu0 0.0
    %594 = vmatprep.subr.mxu0 0.0
    %595 = vmatpush1.xpose.msra.mxu0 0.0
    %596 = vmatprep.subr.mxu0 0.0
    %597 = vmatpush1.xpose.msra.mxu0 0.0
    %598 = vmatprep.subr.mxu0 0.0
    %599 = vmatpush1.xpose.msra.mxu0 0.0
    %600 = vmatprep.subr.mxu0 0.0
    %601 = vmatpush1.xpose.msra.mxu0 0.0
    %602 = vmatprep.subr.mxu0 0.0
    %603 = vmatpush1.xpose.msra.mxu0 0.0
    %604 = vmatprep.subr.mxu0 0.0
    %605 = vmatpush1.xpose.msra.mxu0 0.0
    %606 = vmatprep.subr.mxu0 0.0
    %607 = vmatpush1.xpose.msra.mxu0 0.0
    %608 = vmatprep.subr.mxu0 0.0
    %609 = vmatpush1.xpose.msra.mxu0 0.0
    %610 = vmatprep.subr.mxu0 0.0
    %611 = vmatpush1.xpose.msra.mxu0 0.0
    %612 = vmatprep.mubr.f32.mxu0 0.0
    %613 = vmatmul.mubr.f32.gmra.mrb[0].mxu0 %v544
    %v614 = vpop.f32.mrb[0].mxu0
    %v615 = vadd.f32 0.0, %v614
    %v616 = vpop.f32.mrb[0].mxu0
    %617 = vdwg.mxu0
    %618 = vrot.lane.b32.xlu0 %v158, 96
    %v619 = vpop.permute.xlu0 %618
    %v620 = vsel %vm163, %v158, 0
    %v622 = vsel %vm163, %v619, 0
    %624 = vmatprep.subr.mxu0 0.0
    %625 = vmatpush1.xpose.msra.mxu0 %v622
    %626 = vmatprep.subr.mxu0 0.0
    %627 = vmatpush1.xpose.msra.mxu0 0.0
    %628 = vmatprep.subr.mxu0 0.0
    %629 = vmatpush1.xpose.msra.mxu0 0.0
    %630 = vmatprep.subr.mxu0 0.0
    %631 = vmatpush1.xpose.msra.mxu0 0.0
    %632 = vmatprep.subr.mxu0 0.0
    %633 = vmatpush1.xpose.msra.mxu0 0.0
    %634 = vmatprep.subr.mxu0 0.0
    %635 = vmatpush1.xpose.msra.mxu0 0.0
    %636 = vmatprep.subr.mxu0 0.0
    %637 = vmatpush1.xpose.msra.mxu0 0.0
    %638 = vmatprep.subr.mxu0 0.0
    %639 = vmatpush1.xpose.msra.mxu0 0.0
    %640 = vmatprep.subr.mxu0 0.0
    %641 = vmatpush1.xpose.msra.mxu0 0.0
    %642 = vmatprep.subr.mxu0 0.0
    %643 = vmatpush1.xpose.msra.mxu0 0.0
    %644 = vmatprep.subr.mxu0 0.0
    %645 = vmatpush1.xpose.msra.mxu0 0.0
    %646 = vmatprep.subr.mxu0 0.0
    %647 = vmatpush1.xpose.msra.mxu0 0.0
    %648 = vmatprep.subr.mxu0 0.0
    %649 = vmatpush1.xpose.msra.mxu0 0.0
    %650 = vmatprep.subr.mxu0 0.0
    %651 = vmatpush1.xpose.msra.mxu0 0.0
    %652 = vmatprep.subr.mxu0 0.0
    %653 = vmatpush1.xpose.msra.mxu0 0.0
    %654 = vmatprep.subr.mxu0 0.0
    %655 = vmatpush1.xpose.msra.mxu0 0.0
    %656 = vmatprep.subr.mxu0 0.0
    %657 = vmatpush1.xpose.msra.mxu0 0.0
    %658 = vmatprep.subr.mxu0 0.0
    %659 = vmatpush1.xpose.msra.mxu0 0.0
    %660 = vmatprep.subr.mxu0 0.0
    %661 = vmatpush1.xpose.msra.mxu0 0.0
    %662 = vmatprep.subr.mxu0 0.0
    %663 = vmatpush1.xpose.msra.mxu0 0.0
    %664 = vmatprep.subr.mxu0 0.0
    %665 = vmatpush1.xpose.msra.mxu0 0.0
    %666 = vmatprep.subr.mxu0 0.0
    %667 = vmatpush1.xpose.msra.mxu0 0.0
    %668 = vmatprep.subr.mxu0 0.0
    %669 = vmatpush1.xpose.msra.mxu0 0.0
    %670 = vmatprep.subr.mxu0 0.0
    %671 = vmatpush1.xpose.msra.mxu0 0.0
    %672 = vmatprep.subr.mxu0 0.0
    %673 = vmatpush1.xpose.msra.mxu0 0.0
    %674 = vmatprep.subr.mxu0 0.0
    %675 = vmatpush1.xpose.msra.mxu0 0.0
    %676 = vmatprep.subr.mxu0 0.0
    %677 = vmatpush1.xpose.msra.mxu0 0.0
    %678 = vmatprep.subr.mxu0 0.0
    %679 = vmatpush1.xpose.msra.mxu0 0.0
    %680 = vmatprep.subr.mxu0 0.0
    %681 = vmatpush1.xpose.msra.mxu0 0.0
    %682 = vmatprep.subr.mxu0 0.0
    %683 = vmatpush1.xpose.msra.mxu0 0.0
    %684 = vmatprep.subr.mxu0 0.0
    %685 = vmatpush1.xpose.msra.mxu0 0.0
    %686 = vmatprep.subr.mxu0 0.0
    %687 = vmatpush1.xpose.msra.mxu0 0.0
    %688 = vmatprep.mubr.f32.mxu0 0.0
    %689 = vmatmul.mubr.f32.gmra.mrb[0].mxu0 %v620
    %v690 = vpop.f32.mrb[0].mxu0
    %v691 = vadd.f32 0.0, %v690
    %v692 = vpop.f32.mrb[0].mxu0
    %693 = vdwg.mxu0
    %694 = vrot.lane.b32.xlu0 %v160, 96
    %v695 = vpop.permute.xlu0 %694
    %v696 = vsel %vm163, %v160, 0
    %v698 = vsel %vm163, %v695, 0
    %700 = vmatprep.subr.mxu0 0.0
    %701 = vmatpush1.xpose.msra.mxu0 %v698
    %702 = vmatprep.subr.mxu0 0.0
    %703 = vmatpush1.xpose.msra.mxu0 0.0
    %704 = vmatprep.subr.mxu0 0.0
    %705 = vmatpush1.xpose.msra.mxu0 0.0
    %706 = vmatprep.subr.mxu0 0.0
    %707 = vmatpush1.xpose.msra.mxu0 0.0
    %708 = vmatprep.subr.mxu0 0.0
    %709 = vmatpush1.xpose.msra.mxu0 0.0
    %710 = vmatprep.subr.mxu0 0.0
    %711 = vmatpush1.xpose.msra.mxu0 0.0
    %712 = vmatprep.subr.mxu0 0.0
    %713 = vmatpush1.xpose.msra.mxu0 0.0
    %714 = vmatprep.subr.mxu0 0.0
    %715 = vmatpush1.xpose.msra.mxu0 0.0
    %716 = vmatprep.subr.mxu0 0.0
    %717 = vmatpush1.xpose.msra.mxu0 0.0
    %718 = vmatprep.subr.mxu0 0.0
    %719 = vmatpush1.xpose.msra.mxu0 0.0
    %720 = vmatprep.subr.mxu0 0.0
    %721 = vmatpush1.xpose.msra.mxu0 0.0
    %722 = vmatprep.subr.mxu0 0.0
    %723 = vmatpush1.xpose.msra.mxu0 0.0
    %724 = vmatprep.subr.mxu0 0.0
    %725 = vmatpush1.xpose.msra.mxu0 0.0
    %726 = vmatprep.subr.mxu0 0.0
    %727 = vmatpush1.xpose.msra.mxu0 0.0
    %728 = vmatprep.subr.mxu0 0.0
    %729 = vmatpush1.xpose.msra.mxu0 0.0
    %730 = vmatprep.subr.mxu0 0.0
    %731 = vmatpush1.xpose.msra.mxu0 0.0
    %732 = vmatprep.subr.mxu0 0.0
    %733 = vmatpush1.xpose.msra.mxu0 0.0
    %734 = vmatprep.subr.mxu0 0.0
    %735 = vmatpush1.xpose.msra.mxu0 0.0
    %736 = vmatprep.subr.mxu0 0.0
    %737 = vmatpush1.xpose.msra.mxu0 0.0
    %738 = vmatprep.subr.mxu0 0.0
    %739 = vmatpush1.xpose.msra.mxu0 0.0
    %740 = vmatprep.subr.mxu0 0.0
    %741 = vmatpush1.xpose.msra.mxu0 0.0
    %742 = vmatprep.subr.mxu0 0.0
    %743 = vmatpush1.xpose.msra.mxu0 0.0
    %744 = vmatprep.subr.mxu0 0.0
    %745 = vmatpush1.xpose.msra.mxu0 0.0
    %746 = vmatprep.subr.mxu0 0.0
    %747 = vmatpush1.xpose.msra.mxu0 0.0
    %748 = vmatprep.subr.mxu0 0.0
    %749 = vmatpush1.xpose.msra.mxu0 0.0
    %750 = vmatprep.subr.mxu0 0.0
    %751 = vmatpush1.xpose.msra.mxu0 0.0
    %752 = vmatprep.subr.mxu0 0.0
    %753 = vmatpush1.xpose.msra.mxu0 0.0
    %754 = vmatprep.subr.mxu0 0.0
    %755 = vmatpush1.xpose.msra.mxu0 0.0
    %756 = vmatprep.subr.mxu0 0.0
    %757 = vmatpush1.xpose.msra.mxu0 0.0
    %758 = vmatprep.subr.mxu0 0.0
    %759 = vmatpush1.xpose.msra.mxu0 0.0
    %760 = vmatprep.subr.mxu0 0.0
    %761 = vmatpush1.xpose.msra.mxu0 0.0
    %762 = vmatprep.subr.mxu0 0.0
    %763 = vmatpush1.xpose.msra.mxu0 0.0
    %764 = vmatprep.mubr.f32.mxu0 0.0
    %765 = vmatmul.mubr.f32.gmra.mrb[0].mxu0 %v696
    %v766 = vpop.f32.mrb[0].mxu0
    %v767 = vadd.f32 0.0, %v766
    %v768 = vpop.f32.mrb[0].mxu0
    %769 = vdwg.mxu0
    %v770 = vsel %vm163, %v235, -inf
    %771 = vmax.xlane.f32.xlu0 %v770
    %v772 = vpop.xlane.xlu0 %771
    %v773 = vsel %vm163, %v311, -inf
    %774 = vmax.xlane.f32.xlu0 %v773
    %v775 = vpop.xlane.xlu0 %774
    %v776 = vsel %vm163, %v387, -inf
    %777 = vmax.xlane.f32.xlu0 %v776
    %v778 = vpop.xlane.xlu0 %777
    %v779 = vsel %vm163, %v463, -inf
    %780 = vmax.xlane.f32.xlu0 %v779
    %v781 = vpop.xlane.xlu0 %780
    %v782 = vsel %vm163, %v539, -inf
    %783 = vmax.xlane.f32.xlu0 %v782
    %v784 = vpop.xlane.xlu0 %783
    %v785 = vsel %vm163, %v615, -inf
    %786 = vmax.xlane.f32.xlu0 %v785
    %v787 = vpop.xlane.xlu0 %786
    %v788 = vsel %vm163, %v691, -inf
    %789 = vmax.xlane.f32.xlu0 %v788
    %v790 = vpop.xlane.xlu0 %789
    %v791 = vsel %vm163, %v767, -inf
    %792 = vmax.xlane.f32.xlu0 %v791
    %v793 = vpop.xlane.xlu0 %792
    %v794 = vsub.f32 %v235, %v772
    %v795 = vsub.f32 %v311, %v775
    %v796 = vsub.f32 %v387, %v778
    %v797 = vsub.f32 %v463, %v781
    %v798 = vsub.f32 %v539, %v784
    %v799 = vsub.f32 %v615, %v787
    %v800 = vsub.f32 %v691, %v790
    %v801 = vsub.f32 %v767, %v793
    %v802 = vmul.f32 %v794, 1.442695
    %v803 = vpow.pop %v802
    %v804 = vmul.f32 %v795, 1.442695
    %v805 = vpow.pop %v804
    %v806 = vmul.f32 %v796, 1.442695
    %v807 = vpow.pop %v806
    %v808 = vmul.f32 %v797, 1.442695
    %v809 = vpow.pop %v808
    %v810 = vmul.f32 %v798, 1.442695
    %v811 = vpow.pop %v810
    %v812 = vmul.f32 %v799, 1.442695
    %v813 = vpow.pop %v812
    %v814 = vmul.f32 %v800, 1.442695
    %v815 = vpow.pop %v814
    %v816 = vmul.f32 %v801, 1.442695
    %v817 = vpow.pop %v816
    %v818 = vsel %vm163, %v803, 0.0
    %819 = vadd.xlane.f32.xlu0 %v818
    %v820 = vpop.xlane.xlu0 %819
    %v821 = vsel %vm163, %v805, 0.0
    %822 = vadd.xlane.f32.xlu0 %v821
    %v823 = vpop.xlane.xlu0 %822
    %v824 = vsel %vm163, %v807, 0.0
    %825 = vadd.xlane.f32.xlu0 %v824
    %v826 = vpop.xlane.xlu0 %825
    %v827 = vsel %vm163, %v809, 0.0
    %828 = vadd.xlane.f32.xlu0 %v827
    %v829 = vpop.xlane.xlu0 %828
    %v830 = vsel %vm163, %v811, 0.0
    %831 = vadd.xlane.f32.xlu0 %v830
    %v832 = vpop.xlane.xlu0 %831
    %v833 = vsel %vm163, %v813, 0.0
    %834 = vadd.xlane.f32.xlu0 %v833
    %v835 = vpop.xlane.xlu0 %834
    %v836 = vsel %vm163, %v815, 0.0
    %837 = vadd.xlane.f32.xlu0 %v836
    %v838 = vpop.xlane.xlu0 %837
    %v839 = vsel %vm163, %v817, 0.0
    %840 = vadd.xlane.f32.xlu0 %v839
    %v841 = vpop.xlane.xlu0 %840
    %v842 = vrcp.pop %v820
    %v843 = vmul.f32 %v803, %v842
    %v844 = vrcp.pop %v823
    %v845 = vmul.f32 %v805, %v844
    %v846 = vrcp.pop %v826
    %v847 = vmul.f32 %v807, %v846
    %v848 = vrcp.pop %v829
    %v849 = vmul.f32 %v809, %v848
    %v850 = vrcp.pop %v832
    %v851 = vmul.f32 %v811, %v850
    %v852 = vrcp.pop %v835
    %v853 = vmul.f32 %v813, %v852
    %v854 = vrcp.pop %v838
    %v855 = vmul.f32 %v815, %v854
    %v856 = vrcp.pop %v841
    %v857 = vmul.f32 %v817, %v856
    %858 = vrot.lane.b32.xlu0 %v139, 64
    %v859 = vpop.permute.xlu0 %858
    %v862 = vsel %vm163, %v843, 0
    %864 = vmatprep.subr.mxu0 0.0
    %865 = vmatpush1.msra.mxu0 %v859
    %866 = vmatprep.subr.mxu0 0.0
    %867 = vmatpush1.msra.mxu0 0.0
    %868 = vmatprep.subr.mxu0 0.0
    %869 = vmatpush1.msra.mxu0 0.0
    %870 = vmatprep.subr.mxu0 0.0
    %871 = vmatpush1.msra.mxu0 0.0
    %872 = vmatprep.subr.mxu0 0.0
    %873 = vmatpush1.msra.mxu0 0.0
    %874 = vmatprep.subr.mxu0 0.0
    %875 = vmatpush1.msra.mxu0 0.0
    %876 = vmatprep.subr.mxu0 0.0
    %877 = vmatpush1.msra.mxu0 0.0
    %878 = vmatprep.subr.mxu0 0.0
    %879 = vmatpush1.msra.mxu0 0.0
    %880 = vmatprep.subr.mxu0 0.0
    %881 = vmatpush1.msra.mxu0 0.0
    %882 = vmatprep.subr.mxu0 0.0
    %883 = vmatpush1.msra.mxu0 0.0
    %884 = vmatprep.subr.mxu0 0.0
    %885 = vmatpush1.msra.mxu0 0.0
    %886 = vmatprep.subr.mxu0 0.0
    %887 = vmatpush1.msra.mxu0 0.0
    %888 = vmatprep.subr.mxu0 0.0
    %889 = vmatpush1.msra.mxu0 0.0
    %890 = vmatprep.subr.mxu0 0.0
    %891 = vmatpush1.msra.mxu0 0.0
    %892 = vmatprep.subr.mxu0 0.0
    %893 = vmatpush1.msra.mxu0 0.0
    %894 = vmatprep.subr.mxu0 0.0
    %895 = vmatpush1.msra.mxu0 0.0
    %896 = vmatprep.subr.mxu0 0.0
    %897 = vmatpush1.msra.mxu0 0.0
    %898 = vmatprep.subr.mxu0 0.0
    %899 = vmatpush1.msra.mxu0 0.0
    %900 = vmatprep.subr.mxu0 0.0
    %901 = vmatpush1.msra.mxu0 0.0
    %902 = vmatprep.subr.mxu0 0.0
    %903 = vmatpush1.msra.mxu0 0.0
    %904 = vmatprep.subr.mxu0 0.0
    %905 = vmatpush1.msra.mxu0 0.0
    %906 = vmatprep.subr.mxu0 0.0
    %907 = vmatpush1.msra.mxu0 0.0
    %908 = vmatprep.subr.mxu0 0.0
    %909 = vmatpush1.msra.mxu0 0.0
    %910 = vmatprep.subr.mxu0 0.0
    %911 = vmatpush1.msra.mxu0 0.0
    %912 = vmatprep.subr.mxu0 0.0
    %913 = vmatpush1.msra.mxu0 0.0
    %914 = vmatprep.subr.mxu0 0.0
    %915 = vmatpush1.msra.mxu0 0.0
    %916 = vmatprep.subr.mxu0 0.0
    %917 = vmatpush1.msra.mxu0 0.0
    %918 = vmatprep.subr.mxu0 0.0
    %919 = vmatpush1.msra.mxu0 0.0
    %920 = vmatprep.subr.mxu0 0.0
    %921 = vmatpush1.msra.mxu0 0.0
    %922 = vmatprep.subr.mxu0 0.0
    %923 = vmatpush1.msra.mxu0 0.0
    %924 = vmatprep.subr.mxu0 0.0
    %925 = vmatpush1.msra.mxu0 0.0
    %926 = vmatprep.subr.mxu0 0.0
    %927 = vmatpush1.msra.mxu0 0.0
    %928 = vmatprep.mubr.f32.mxu0 0.0
    %929 = vmatmul.mubr.f32.gmra.mrb[0].mxu0 %v862
    %v930 = vpop.f32.mrb[0].mxu0
    %v931 = vadd.f32 0.0, %v930
    %v932 = vpop.f32.mrb[0].mxu0
    %933 = vdwg.mxu0
    %934 = vrot.lane.b32.xlu0 %v144, 64
    %v935 = vpop.permute.xlu0 %934
    %v938 = vsel %vm163, %v845, 0
    %940 = vmatprep.subr.mxu0 0.0
    %941 = vmatpush1.msra.mxu0 %v935
    %942 = vmatprep.subr.mxu0 0.0
    %943 = vmatpush1.msra.mxu0 0.0
    %944 = vmatprep.subr.mxu0 0.0
    %945 = vmatpush1.msra.mxu0 0.0
    %946 = vmatprep.subr.mxu0 0.0
    %947 = vmatpush1.msra.mxu0 0.0
    %948 = vmatprep.subr.mxu0 0.0
    %949 = vmatpush1.msra.mxu0 0.0
    %950 = vmatprep.subr.mxu0 0.0
    %951 = vmatpush1.msra.mxu0 0.0
    %952 = vmatprep.subr.mxu0 0.0
    %953 = vmatpush1.msra.mxu0 0.0
    %954 = vmatprep.subr.mxu0 0.0
    %955 = vmatpush1.msra.mxu0 0.0
    %956 = vmatprep.subr.mxu0 0.0
    %957 = vmatpush1.msra.mxu0 0.0
    %958 = vmatprep.subr.mxu0 0.0
    %959 = vmatpush1.msra.mxu0 0.0
    %960 = vmatprep.subr.mxu0 0.0
    %961 = vmatpush1.msra.mxu0 0.0
    %962 = vmatprep.subr.mxu0 0.0
    %963 = vmatpush1.msra.mxu0 0.0
    %964 = vmatprep.subr.mxu0 0.0
    %965 = vmatpush1.msra.mxu0 0.0
    %966 = vmatprep.subr.mxu0 0.0
    %967 = vmatpush1.msra.mxu0 0.0
    %968 = vmatprep.subr.mxu0 0.0
    %969 = vmatpush1.msra.mxu0 0.0
    %970 = vmatprep.subr.mxu0 0.0
    %971 = vmatpush1.msra.mxu0 0.0
    %972 = vmatprep.subr.mxu0 0.0
    %973 = vmatpush1.msra.mxu0 0.0
    %974 = vmatprep.subr.mxu0 0.0
    %975 = vmatpush1.msra.mxu0 0.0
    %976 = vmatprep.subr.mxu0 0.0
    %977 = vmatpush1.msra.mxu0 0.0
    %978 = vmatprep.subr.mxu0 0.0
    %979 = vmatpush1.msra.mxu0 0.0
    %980 = vmatprep.subr.mxu0 0.0
    %981 = vmatpush1.msra.mxu0 0.0
    %982 = vmatprep.subr.mxu0 0.0
    %983 = vmatpush1.msra.mxu0 0.0
    %984 = vmatprep.subr.mxu0 0.0
    %985 = vmatpush1.msra.mxu0 0.0
    %986 = vmatprep.subr.mxu0 0.0
    %987 = vmatpush1.msra.mxu0 0.0
    %988 = vmatprep.subr.mxu0 0.0
    %989 = vmatpush1.msra.mxu0 0.0
    %990 = vmatprep.subr.mxu0 0.0
    %991 = vmatpush1.msra.mxu0 0.0
    %992 = vmatprep.subr.mxu0 0.0
    %993 = vmatpush1.msra.mxu0 0.0
    %994 = vmatprep.subr.mxu0 0.0
    %995 = vmatpush1.msra.mxu0 0.0
    %996 = vmatprep.subr.mxu0 0.0
    %997 = vmatpush1.msra.mxu0 0.0
    %998 = vmatprep.subr.mxu0 0.0
    %999 = vmatpush1.msra.mxu0 0.0
    %1000 = vmatprep.subr.mxu0 0.0
    %1001 = vmatpush1.msra.mxu0 0.0
    %1002 = vmatprep.subr.mxu0 0.0
    %1003 = vmatpush1.msra.mxu0 0.0
    %1004 = vmatprep.mubr.f32.mxu0 0.0
    %1005 = vmatmul.mubr.f32.gmra.mrb[0].mxu0 %v938
    %v1006 = vpop.f32.mrb[0].mxu0
    %v1007 = vadd.f32 0.0, %v1006
    %v1008 = vpop.f32.mrb[0].mxu0
    %1009 = vdwg.mxu0
    %1010 = vrot.lane.b32.xlu0 %v150, 64
    %v1011 = vpop.permute.xlu0 %1010
    %v1014 = vsel %vm163, %v847, 0
    %1016 = vmatprep.subr.mxu0 0.0
    %1017 = vmatpush1.msra.mxu0 %v1011
    %1018 = vmatprep.subr.mxu0 0.0
    %1019 = vmatpush1.msra.mxu0 0.0
    %1020 = vmatprep.subr.mxu0 0.0
    %1021 = vmatpush1.msra.mxu0 0.0
    %1022 = vmatprep.subr.mxu0 0.0
    %1023 = vmatpush1.msra.mxu0 0.0
    %1024 = vmatprep.subr.mxu0 0.0
    %1025 = vmatpush1.msra.mxu0 0.0
    %1026 = vmatprep.subr.mxu0 0.0
    %1027 = vmatpush1.msra.mxu0 0.0
    %1028 = vmatprep.subr.mxu0 0.0
    %1029 = vmatpush1.msra.mxu0 0.0
    %1030 = vmatprep.subr.mxu0 0.0
    %1031 = vmatpush1.msra.mxu0 0.0
    %1032 = vmatprep.subr.mxu0 0.0
    %1033 = vmatpush1.msra.mxu0 0.0
    %1034 = vmatprep.subr.mxu0 0.0
    %1035 = vmatpush1.msra.mxu0 0.0
    %1036 = vmatprep.subr.mxu0 0.0
    %1037 = vmatpush1.msra.mxu0 0.0
    %1038 = vmatprep.subr.mxu0 0.0
    %1039 = vmatpush1.msra.mxu0 0.0
    %1040 = vmatprep.subr.mxu0 0.0
    %1041 = vmatpush1.msra.mxu0 0.0
    %1042 = vmatprep.subr.mxu0 0.0
    %1043 = vmatpush1.msra.mxu0 0.0
    %1044 = vmatprep.subr.mxu0 0.0
    %1045 = vmatpush1.msra.mxu0 0.0
    %1046 = vmatprep.subr.mxu0 0.0
    %1047 = vmatpush1.msra.mxu0 0.0
    %1048 = vmatprep.subr.mxu0 0.0
    %1049 = vmatpush1.msra.mxu0 0.0
    %1050 = vmatprep.subr.mxu0 0.0
    %1051 = vmatpush1.msra.mxu0 0.0
    %1052 = vmatprep.subr.mxu0 0.0
    %1053 = vmatpush1.msra.mxu0 0.0
    %1054 = vmatprep.subr.mxu0 0.0
    %1055 = vmatpush1.msra.mxu0 0.0
    %1056 = vmatprep.subr.mxu0 0.0
    %1057 = vmatpush1.msra.mxu0 0.0
    %1058 = vmatprep.subr.mxu0 0.0
    %1059 = vmatpush1.msra.mxu0 0.0
    %1060 = vmatprep.subr.mxu0 0.0
    %1061 = vmatpush1.msra.mxu0 0.0
    %1062 = vmatprep.subr.mxu0 0.0
    %1063 = vmatpush1.msra.mxu0 0.0
    %1064 = vmatprep.subr.mxu0 0.0
    %1065 = vmatpush1.msra.mxu0 0.0
    %1066 = vmatprep.subr.mxu0 0.0
    %1067 = vmatpush1.msra.mxu0 0.0
    %1068 = vmatprep.subr.mxu0 0.0
    %1069 = vmatpush1.msra.mxu0 0.0
    %1070 = vmatprep.subr.mxu0 0.0
    %1071 = vmatpush1.msra.mxu0 0.0
    %1072 = vmatprep.subr.mxu0 0.0
    %1073 = vmatpush1.msra.mxu0 0.0
    %1074 = vmatprep.subr.mxu0 0.0
    %1075 = vmatpush1.msra.mxu0 0.0
    %1076 = vmatprep.subr.mxu0 0.0
    %1077 = vmatpush1.msra.mxu0 0.0
    %1078 = vmatprep.subr.mxu0 0.0
    %1079 = vmatpush1.msra.mxu0 0.0
    %1080 = vmatprep.mubr.f32.mxu0 0.0
    %1081 = vmatmul.mubr.f32.gmra.mrb[0].mxu0 %v1014
    %v1082 = vpop.f32.mrb[0].mxu0
    %v1083 = vadd.f32 0.0, %v1082
    %v1084 = vpop.f32.mrb[0].mxu0
    %1085 = vdwg.mxu0
    %1086 = vrot.lane.b32.xlu0 %v152, 64
    %v1087 = vpop.permute.xlu0 %1086
    %v1090 = vsel %vm163, %v849, 0
    %1092 = vmatprep.subr.mxu0 0.0
    %1093 = vmatpush1.msra.mxu0 %v1087
    %1094 = vmatprep.subr.mxu0 0.0
    %1095 = vmatpush1.msra.mxu0 0.0
    %1096 = vmatprep.subr.mxu0 0.0
    %1097 = vmatpush1.msra.mxu0 0.0
    %1098 = vmatprep.subr.mxu0 0.0
    %1099 = vmatpush1.msra.mxu0 0.0
    %1100 = vmatprep.subr.mxu0 0.0
    %1101 = vmatpush1.msra.mxu0 0.0
    %1102 = vmatprep.subr.mxu0 0.0
    %1103 = vmatpush1.msra.mxu0 0.0
    %1104 = vmatprep.subr.mxu0 0.0
    %1105 = vmatpush1.msra.mxu0 0.0
    %1106 = vmatprep.subr.mxu0 0.0
    %1107 = vmatpush1.msra.mxu0 0.0
    %1108 = vmatprep.subr.mxu0 0.0
    %1109 = vmatpush1.msra.mxu0 0.0
    %1110 = vmatprep.subr.mxu0 0.0
    %1111 = vmatpush1.msra.mxu0 0.0
    %1112 = vmatprep.subr.mxu0 0.0
    %1113 = vmatpush1.msra.mxu0 0.0
    %1114 = vmatprep.subr.mxu0 0.0
    %1115 = vmatpush1.msra.mxu0 0.0
    %1116 = vmatprep.subr.mxu0 0.0
    %1117 = vmatpush1.msra.mxu0 0.0
    %1118 = vmatprep.subr.mxu0 0.0
    %1119 = vmatpush1.msra.mxu0 0.0
    %1120 = vmatprep.subr.mxu0 0.0
    %1121 = vmatpush1.msra.mxu0 0.0
    %1122 = vmatprep.subr.mxu0 0.0
    %1123 = vmatpush1.msra.mxu0 0.0
    %1124 = vmatprep.subr.mxu0 0.0
    %1125 = vmatpush1.msra.mxu0 0.0
    %1126 = vmatprep.subr.mxu0 0.0
    %1127 = vmatpush1.msra.mxu0 0.0
    %1128 = vmatprep.subr.mxu0 0.0
    %1129 = vmatpush1.msra.mxu0 0.0
    %1130 = vmatprep.subr.mxu0 0.0
    %1131 = vmatpush1.msra.mxu0 0.0
    %1132 = vmatprep.subr.mxu0 0.0
    %1133 = vmatpush1.msra.mxu0 0.0
    %1134 = vmatprep.subr.mxu0 0.0
    %1135 = vmatpush1.msra.mxu0 0.0
    %1136 = vmatprep.subr.mxu0 0.0
    %1137 = vmatpush1.msra.mxu0 0.0
    %1138 = vmatprep.subr.mxu0 0.0
    %1139 = vmatpush1.msra.mxu0 0.0
    %1140 = vmatprep.subr.mxu0 0.0
    %1141 = vmatpush1.msra.mxu0 0.0
    %1142 = vmatprep.subr.mxu0 0.0
    %1143 = vmatpush1.msra.mxu0 0.0
    %1144 = vmatprep.subr.mxu0 0.0
    %1145 = vmatpush1.msra.mxu0 0.0
    %1146 = vmatprep.subr.mxu0 0.0
    %1147 = vmatpush1.msra.mxu0 0.0
    %1148 = vmatprep.subr.mxu0 0.0
    %1149 = vmatpush1.msra.mxu0 0.0
    %1150 = vmatprep.subr.mxu0 0.0
    %1151 = vmatpush1.msra.mxu0 0.0
    %1152 = vmatprep.subr.mxu0 0.0
    %1153 = vmatpush1.msra.mxu0 0.0
    %1154 = vmatprep.subr.mxu0 0.0
    %1155 = vmatpush1.msra.mxu0 0.0
    %1156 = vmatprep.mubr.f32.mxu0 0.0
    %1157 = vmatmul.mubr.f32.gmra.mrb[0].mxu0 %v1090
    %v1158 = vpop.f32.mrb[0].mxu0
    %v1159 = vadd.f32 0.0, %v1158
    %v1160 = vpop.f32.mrb[0].mxu0
    %1161 = vdwg.mxu0
    %1162 = vrot.lane.b32.xlu0 %v154, 64
    %v1163 = vpop.permute.xlu0 %1162
    %v1166 = vsel %vm163, %v851, 0
    %1168 = vmatprep.subr.mxu0 0.0
    %1169 = vmatpush1.msra.mxu0 %v1163
    %1170 = vmatprep.subr.mxu0 0.0
    %1171 = vmatpush1.msra.mxu0 0.0
    %1172 = vmatprep.subr.mxu0 0.0
    %1173 = vmatpush1.msra.mxu0 0.0
    %1174 = vmatprep.subr.mxu0 0.0
    %1175 = vmatpush1.msra.mxu0 0.0
    %1176 = vmatprep.subr.mxu0 0.0
    %1177 = vmatpush1.msra.mxu0 0.0
    %1178 = vmatprep.subr.mxu0 0.0
    %1179 = vmatpush1.msra.mxu0 0.0
    %1180 = vmatprep.subr.mxu0 0.0
    %1181 = vmatpush1.msra.mxu0 0.0
    %1182 = vmatprep.subr.mxu0 0.0
    %1183 = vmatpush1.msra.mxu0 0.0
    %1184 = vmatprep.subr.mxu0 0.0
    %1185 = vmatpush1.msra.mxu0 0.0
    %1186 = vmatprep.subr.mxu0 0.0
    %1187 = vmatpush1.msra.mxu0 0.0
    %1188 = vmatprep.subr.mxu0 0.0
    %1189 = vmatpush1.msra.mxu0 0.0
    %1190 = vmatprep.subr.mxu0 0.0
    %1191 = vmatpush1.msra.mxu0 0.0
    %1192 = vmatprep.subr.mxu0 0.0
    %1193 = vmatpush1.msra.mxu0 0.0
    %1194 = vmatprep.subr.mxu0 0.0
    %1195 = vmatpush1.msra.mxu0 0.0
    %1196 = vmatprep.subr.mxu0 0.0
    %1197 = vmatpush1.msra.mxu0 0.0
    %1198 = vmatprep.subr.mxu0 0.0
    %1199 = vmatpush1.msra.mxu0 0.0
    %1200 = vmatprep.subr.mxu0 0.0
    %1201 = vmatpush1.msra.mxu0 0.0
    %1202 = vmatprep.subr.mxu0 0.0
    %1203 = vmatpush1.msra.mxu0 0.0
    %1204 = vmatprep.subr.mxu0 0.0
    %1205 = vmatpush1.msra.mxu0 0.0
    %1206 = vmatprep.subr.mxu0 0.0
    %1207 = vmatpush1.msra.mxu0 0.0
    %1208 = vmatprep.subr.mxu0 0.0
    %1209 = vmatpush1.msra.mxu0 0.0
    %1210 = vmatprep.subr.mxu0 0.0
    %1211 = vmatpush1.msra.mxu0 0.0
    %1212 = vmatprep.subr.mxu0 0.0
    %1213 = vmatpush1.msra.mxu0 0.0
    %1214 = vmatprep.subr.mxu0 0.0
    %1215 = vmatpush1.msra.mxu0 0.0
    %1216 = vmatprep.subr.mxu0 0.0
    %1217 = vmatpush1.msra.mxu0 0.0
    %1218 = vmatprep.subr.mxu0 0.0
    %1219 = vmatpush1.msra.mxu0 0.0
    %1220 = vmatprep.subr.mxu0 0.0
    %1221 = vmatpush1.msra.mxu0 0.0
    %1222 = vmatprep.subr.mxu0 0.0
    %1223 = vmatpush1.msra.mxu0 0.0
    %1224 = vmatprep.subr.mxu0 0.0
    %1225 = vmatpush1.msra.mxu0 0.0
    %1226 = vmatprep.subr.mxu0 0.0
    %1227 = vmatpush1.msra.mxu0 0.0
    %1228 = vmatprep.subr.mxu0 0.0
    %1229 = vmatpush1.msra.mxu0 0.0
    %1230 = vmatprep.subr.mxu0 0.0
    %1231 = vmatpush1.msra.mxu0 0.0
    %1232 = vmatprep.mubr.f32.mxu0 0.0
    %1233 = vmatmul.mubr.f32.gmra.mrb[0].mxu0 %v1166
    %v1234 = vpop.f32.mrb[0].mxu0
    %v1235 = vadd.f32 0.0, %v1234
    %v1236 = vpop.f32.mrb[0].mxu0
    %1237 = vdwg.mxu0
    %1238 = vrot.lane.b32.xlu0 %v156, 64
    %v1239 = vpop.permute.xlu0 %1238
    %v1242 = vsel %vm163, %v853, 0
    %1244 = vmatprep.subr.mxu0 0.0
    %1245 = vmatpush1.msra.mxu0 %v1239
    %1246 = vmatprep.subr.mxu0 0.0
    %1247 = vmatpush1.msra.mxu0 0.0
    %1248 = vmatprep.subr.mxu0 0.0
    %1249 = vmatpush1.msra.mxu0 0.0
    %1250 = vmatprep.subr.mxu0 0.0
    %1251 = vmatpush1.msra.mxu0 0.0
    %1252 = vmatprep.subr.mxu0 0.0
    %1253 = vmatpush1.msra.mxu0 0.0
    %1254 = vmatprep.subr.mxu0 0.0
    %1255 = vmatpush1.msra.mxu0 0.0
    %1256 = vmatprep.subr.mxu0 0.0
    %1257 = vmatpush1.msra.mxu0 0.0
    %1258 = vmatprep.subr.mxu0 0.0
    %1259 = vmatpush1.msra.mxu0 0.0
    %1260 = vmatprep.subr.mxu0 0.0
    %1261 = vmatpush1.msra.mxu0 0.0
    %1262 = vmatprep.subr.mxu0 0.0
    %1263 = vmatpush1.msra.mxu0 0.0
    %1264 = vmatprep.subr.mxu0 0.0
    %1265 = vmatpush1.msra.mxu0 0.0
    %1266 = vmatprep.subr.mxu0 0.0
    %1267 = vmatpush1.msra.mxu0 0.0
    %1268 = vmatprep.subr.mxu0 0.0
    %1269 = vmatpush1.msra.mxu0 0.0
    %1270 = vmatprep.subr.mxu0 0.0
    %1271 = vmatpush1.msra.mxu0 0.0
    %1272 = vmatprep.subr.mxu0 0.0
    %1273 = vmatpush1.msra.mxu0 0.0
    %1274 = vmatprep.subr.mxu0 0.0
    %1275 = vmatpush1.msra.mxu0 0.0
    %1276 = vmatprep.subr.mxu0 0.0
    %1277 = vmatpush1.msra.mxu0 0.0
    %1278 = vmatprep.subr.mxu0 0.0
    %1279 = vmatpush1.msra.mxu0 0.0
    %1280 = vmatprep.subr.mxu0 0.0
    %1281 = vmatpush1.msra.mxu0 0.0
    %1282 = vmatprep.subr.mxu0 0.0
    %1283 = vmatpush1.msra.mxu0 0.0
    %1284 = vmatprep.subr.mxu0 0.0
    %1285 = vmatpush1.msra.mxu0 0.0
    %1286 = vmatprep.subr.mxu0 0.0
    %1287 = vmatpush1.msra.mxu0 0.0
    %1288 = vmatprep.subr.mxu0 0.0
    %1289 = vmatpush1.msra.mxu0 0.0
    %1290 = vmatprep.subr.mxu0 0.0
    %1291 = vmatpush1.msra.mxu0 0.0
    %1292 = vmatprep.subr.mxu0 0.0
    %1293 = vmatpush1.msra.mxu0 0.0
    %1294 = vmatprep.subr.mxu0 0.0
    %1295 = vmatpush1.msra.mxu0 0.0
    %1296 = vmatprep.subr.mxu0 0.0
    %1297 = vmatpush1.msra.mxu0 0.0
    %1298 = vmatprep.subr.mxu0 0.0
    %1299 = vmatpush1.msra.mxu0 0.0
    %1300 = vmatprep.subr.mxu0 0.0
    %1301 = vmatpush1.msra.mxu0 0.0
    %1302 = vmatprep.subr.mxu0 0.0
    %1303 = vmatpush1.msra.mxu0 0.0
    %1304 = vmatprep.subr.mxu0 0.0
    %1305 = vmatpush1.msra.mxu0 0.0
    %1306 = vmatprep.subr.mxu0 0.0
    %1307 = vmatpush1.msra.mxu0 0.0
    %1308 = vmatprep.mubr.f32.mxu0 0.0
    %1309 = vmatmul.mubr.f32.gmra.mrb[0].mxu0 %v1242
    %v1310 = vpop.f32.mrb[0].mxu0
    %v1311 = vadd.f32 0.0, %v1310
    %v1312 = vpop.f32.mrb[0].mxu0
    %1313 = vdwg.mxu0
    %1314 = vrot.lane.b32.xlu0 %v158, 64
    %v1315 = vpop.permute.xlu0 %1314
    %v1318 = vsel %vm163, %v855, 0
    %1320 = vmatprep.subr.mxu0 0.0
    %1321 = vmatpush1.msra.mxu0 %v1315
    %1322 = vmatprep.subr.mxu0 0.0
    %1323 = vmatpush1.msra.mxu0 0.0
    %1324 = vmatprep.subr.mxu0 0.0
    %1325 = vmatpush1.msra.mxu0 0.0
    %1326 = vmatprep.subr.mxu0 0.0
    %1327 = vmatpush1.msra.mxu0 0.0
    %1328 = vmatprep.subr.mxu0 0.0
    %1329 = vmatpush1.msra.mxu0 0.0
    %1330 = vmatprep.subr.mxu0 0.0
    %1331 = vmatpush1.msra.mxu0 0.0
    %1332 = vmatprep.subr.mxu0 0.0
    %1333 = vmatpush1.msra.mxu0 0.0
    %1334 = vmatprep.subr.mxu0 0.0
    %1335 = vmatpush1.msra.mxu0 0.0
    %1336 = vmatprep.subr.mxu0 0.0
    %1337 = vmatpush1.msra.mxu0 0.0
    %1338 = vmatprep.subr.mxu0 0.0
    %1339 = vmatpush1.msra.mxu0 0.0
    %1340 = vmatprep.subr.mxu0 0.0
    %1341 = vmatpush1.msra.mxu0 0.0
    %1342 = vmatprep.subr.mxu0 0.0
    %1343 = vmatpush1.msra.mxu0 0.0
    %1344 = vmatprep.subr.mxu0 0.0
    %1345 = vmatpush1.msra.mxu0 0.0
    %1346 = vmatprep.subr.mxu0 0.0
    %1347 = vmatpush1.msra.mxu0 0.0
    %1348 = vmatprep.subr.mxu0 0.0
    %1349 = vmatpush1.msra.mxu0 0.0
    %1350 = vmatprep.subr.mxu0 0.0
    %1351 = vmatpush1.msra.mxu0 0.0
    %1352 = vmatprep.subr.mxu0 0.0
    %1353 = vmatpush1.msra.mxu0 0.0
    %1354 = vmatprep.subr.mxu0 0.0
    %1355 = vmatpush1.msra.mxu0 0.0
    %1356 = vmatprep.subr.mxu0 0.0
    %1357 = vmatpush1.msra.mxu0 0.0
    %1358 = vmatprep.subr.mxu0 0.0
    %1359 = vmatpush1.msra.mxu0 0.0
    %1360 = vmatprep.subr.mxu0 0.0
    %1361 = vmatpush1.msra.mxu0 0.0
    %1362 = vmatprep.subr.mxu0 0.0
    %1363 = vmatpush1.msra.mxu0 0.0
    %1364 = vmatprep.subr.mxu0 0.0
    %1365 = vmatpush1.msra.mxu0 0.0
    %1366 = vmatprep.subr.mxu0 0.0
    %1367 = vmatpush1.msra.mxu0 0.0
    %1368 = vmatprep.subr.mxu0 0.0
    %1369 = vmatpush1.msra.mxu0 0.0
    %1370 = vmatprep.subr.mxu0 0.0
    %1371 = vmatpush1.msra.mxu0 0.0
    %1372 = vmatprep.subr.mxu0 0.0
    %1373 = vmatpush1.msra.mxu0 0.0
    %1374 = vmatprep.subr.mxu0 0.0
    %1375 = vmatpush1.msra.mxu0 0.0
    %1376 = vmatprep.subr.mxu0 0.0
    %1377 = vmatpush1.msra.mxu0 0.0
    %1378 = vmatprep.subr.mxu0 0.0
    %1379 = vmatpush1.msra.mxu0 0.0
    %1380 = vmatprep.subr.mxu0 0.0
    %1381 = vmatpush1.msra.mxu0 0.0
    %1382 = vmatprep.subr.mxu0 0.0
    %1383 = vmatpush1.msra.mxu0 0.0
    %1384 = vmatprep.mubr.f32.mxu0 0.0
    %1385 = vmatmul.mubr.f32.gmra.mrb[0].mxu0 %v1318
    %v1386 = vpop.f32.mrb[0].mxu0
    %v1387 = vadd.f32 0.0, %v1386
    %v1388 = vpop.f32.mrb[0].mxu0
    %1389 = vdwg.mxu0
    %1390 = vrot.lane.b32.xlu0 %v160, 64
    %v1391 = vpop.permute.xlu0 %1390
    %v1394 = vsel %vm163, %v857, 0
    %1396 = vmatprep.subr.mxu0 0.0
    %1397 = vmatpush1.msra.mxu0 %v1391
    %1398 = vmatprep.subr.mxu0 0.0
    %1399 = vmatpush1.msra.mxu0 0.0
    %1400 = vmatprep.subr.mxu0 0.0
    %1401 = vmatpush1.msra.mxu0 0.0
    %1402 = vmatprep.subr.mxu0 0.0
    %1403 = vmatpush1.msra.mxu0 0.0
    %1404 = vmatprep.subr.mxu0 0.0
    %1405 = vmatpush1.msra.mxu0 0.0
    %1406 = vmatprep.subr.mxu0 0.0
    %1407 = vmatpush1.msra.mxu0 0.0
    %1408 = vmatprep.subr.mxu0 0.0
    %1409 = vmatpush1.msra.mxu0 0.0
    %1410 = vmatprep.subr.mxu0 0.0
    %1411 = vmatpush1.msra.mxu0 0.0
    %1412 = vmatprep.subr.mxu0 0.0
    %1413 = vmatpush1.msra.mxu0 0.0
    %1414 = vmatprep.subr.mxu0 0.0
    %1415 = vmatpush1.msra.mxu0 0.0
    %1416 = vmatprep.subr.mxu0 0.0
    %1417 = vmatpush1.msra.mxu0 0.0
    %1418 = vmatprep.subr.mxu0 0.0
    %1419 = vmatpush1.msra.mxu0 0.0
    %1420 = vmatprep.subr.mxu0 0.0
    %1421 = vmatpush1.msra.mxu0 0.0
    %1422 = vmatprep.subr.mxu0 0.0
    %1423 = vmatpush1.msra.mxu0 0.0
    %1424 = vmatprep.subr.mxu0 0.0
    %1425 = vmatpush1.msra.mxu0 0.0
    %1426 = vmatprep.subr.mxu0 0.0
    %1427 = vmatpush1.msra.mxu0 0.0
    %1428 = vmatprep.subr.mxu0 0.0
    %1429 = vmatpush1.msra.mxu0 0.0
    %1430 = vmatprep.subr.mxu0 0.0
    %1431 = vmatpush1.msra.mxu0 0.0
    %1432 = vmatprep.subr.mxu0 0.0
    %1433 = vmatpush1.msra.mxu0 0.0
    %1434 = vmatprep.subr.mxu0 0.0
    %1435 = vmatpush1.msra.mxu0 0.0
    %1436 = vmatprep.subr.mxu0 0.0
    %1437 = vmatpush1.msra.mxu0 0.0
    %1438 = vmatprep.subr.mxu0 0.0
    %1439 = vmatpush1.msra.mxu0 0.0
    %1440 = vmatprep.subr.mxu0 0.0
    %1441 = vmatpush1.msra.mxu0 0.0
    %1442 = vmatprep.subr.mxu0 0.0
    %1443 = vmatpush1.msra.mxu0 0.0
    %1444 = vmatprep.subr.mxu0 0.0
    %1445 = vmatpush1.msra.mxu0 0.0
    %1446 = vmatprep.subr.mxu0 0.0
    %1447 = vmatpush1.msra.mxu0 0.0
    %1448 = vmatprep.subr.mxu0 0.0
    %1449 = vmatpush1.msra.mxu0 0.0
    %1450 = vmatprep.subr.mxu0 0.0
    %1451 = vmatpush1.msra.mxu0 0.0
    %1452 = vmatprep.subr.mxu0 0.0
    %1453 = vmatpush1.msra.mxu0 0.0
    %1454 = vmatprep.subr.mxu0 0.0
    %1455 = vmatpush1.msra.mxu0 0.0
    %1456 = vmatprep.subr.mxu0 0.0
    %1457 = vmatpush1.msra.mxu0 0.0
    %1458 = vmatprep.subr.mxu0 0.0
    %1459 = vmatpush1.msra.mxu0 0.0
    %1460 = vmatprep.mubr.f32.mxu0 0.0
    %1461 = vmatmul.mubr.f32.gmra.mrb[0].mxu0 %v1394
    %v1462 = vpop.f32.mrb[0].mxu0
    %v1463 = vadd.f32 0.0, %v1462
    %v1464 = vpop.f32.mrb[0].mxu0
    %1465 = vdwg.mxu0
    %1468 = vrot.lane.b32.xlu0 %v1083, 8
    %v1469 = vpop.permute.xlu0 %1468
    %1470 = vrot.lane.b32.xlu0 %v1159, 8
    %v1471 = vpop.permute.xlu0 %1470
    %1476 = vrot.lane.b32.xlu0 %v1235, 16
    %v1477 = vpop.permute.xlu0 %1476
    %1478 = vrot.lane.b32.xlu0 %v1311, 16
    %v1479 = vpop.permute.xlu0 %1478
    %1484 = vrot.lane.b32.xlu0 %v1387, 24
    %v1485 = vpop.permute.xlu0 %1484
    %1486 = vrot.lane.b32.xlu0 %v1463, 24
    %v1487 = vpop.permute.xlu0 %1486
    %v1490 = vsel %vm163, %v931, %v1469
    %v1491 = vsel %vm163, %v1007, %v1471
    %vm1492 = vcmask 130048
    %v1493 = vsel %vm1492, %v1490, %v1477
    %v1494 = vsel %vm1492, %v1491, %v1479
    %vm1495 = vcmask 195584
    %v1496 = vsel %vm1495, %v1493, %v1485
    %v1497 = vsel %vm1495, %v1494, %v1487
    %v1498 = vlaneseq
    %v1499 = vshrl.u32 %v1498, 7
    %v1500 = vsub.s32 0, %v1499
    %v1501 = vrot.slane %v52, %v1500
    %v1503 = vsel %vm65, %v1496, 0
    %v1506 = vsel %vm65, %v1497, 0
    %1508 = vmatprep.subr.mxu0 0.0
    %1509 = vmatpush1.msra.mxu0 %v35
    %1510 = vmatprep.subr.mxu0 0.0
    %1511 = vmatpush1.msra.mxu0 %v36
    %1512 = vmatprep.subr.mxu0 0.0
    %1513 = vmatpush1.msra.mxu0 %v37
    %1514 = vmatprep.subr.mxu0 0.0
    %1515 = vmatpush1.msra.mxu0 %v38
    %1516 = vmatprep.subr.mxu0 0.0
    %1517 = vmatpush1.msra.mxu0 0.0
    %1518 = vmatprep.subr.mxu0 0.0
    %1519 = vmatpush1.msra.mxu0 0.0
    %1520 = vmatprep.subr.mxu0 0.0
    %1521 = vmatpush1.msra.mxu0 0.0
    %1522 = vmatprep.subr.mxu0 0.0
    %1523 = vmatpush1.msra.mxu0 0.0
    %1524 = vmatprep.subr.mxu0 0.0
    %1525 = vmatpush1.msra.mxu0 0.0
    %1526 = vmatprep.subr.mxu0 0.0
    %1527 = vmatpush1.msra.mxu0 0.0
    %1528 = vmatprep.subr.mxu0 0.0
    %1529 = vmatpush1.msra.mxu0 0.0
    %1530 = vmatprep.subr.mxu0 0.0
    %1531 = vmatpush1.msra.mxu0 0.0
    %1532 = vmatprep.subr.mxu0 0.0
    %1533 = vmatpush1.msra.mxu0 0.0
    %1534 = vmatprep.subr.mxu0 0.0
    %1535 = vmatpush1.msra.mxu0 0.0
    %1536 = vmatprep.subr.mxu0 0.0
    %1537 = vmatpush1.msra.mxu0 0.0
    %1538 = vmatprep.subr.mxu0 0.0
    %1539 = vmatpush1.msra.mxu0 0.0
    %1540 = vmatprep.subr.mxu0 0.0
    %1541 = vmatpush1.msra.mxu0 0.0
    %1542 = vmatprep.subr.mxu0 0.0
    %1543 = vmatpush1.msra.mxu0 0.0
    %1544 = vmatprep.subr.mxu0 0.0
    %1545 = vmatpush1.msra.mxu0 0.0
    %1546 = vmatprep.subr.mxu0 0.0
    %1547 = vmatpush1.msra.mxu0 0.0
    %1548 = vmatprep.subr.mxu0 0.0
    %1549 = vmatpush1.msra.mxu0 0.0
    %1550 = vmatprep.subr.mxu0 0.0
    %1551 = vmatpush1.msra.mxu0 0.0
    %1552 = vmatprep.subr.mxu0 0.0
    %1553 = vmatpush1.msra.mxu0 0.0
    %1554 = vmatprep.subr.mxu0 0.0
    %1555 = vmatpush1.msra.mxu0 0.0
    %1556 = vmatprep.subr.mxu0 0.0
    %1557 = vmatpush1.msra.mxu0 0.0
    %1558 = vmatprep.subr.mxu0 0.0
    %1559 = vmatpush1.msra.mxu0 0.0
    %1560 = vmatprep.subr.mxu0 0.0
    %1561 = vmatpush1.msra.mxu0 0.0
    %1562 = vmatprep.subr.mxu0 0.0
    %1563 = vmatpush1.msra.mxu0 0.0
    %1564 = vmatprep.subr.mxu0 0.0
    %1565 = vmatpush1.msra.mxu0 0.0
    %1566 = vmatprep.subr.mxu0 0.0
    %1567 = vmatpush1.msra.mxu0 0.0
    %1568 = vmatprep.subr.mxu0 0.0
    %1569 = vmatpush1.msra.mxu0 0.0
    %1570 = vmatprep.subr.mxu0 0.0
    %1571 = vmatpush1.msra.mxu0 0.0
    %1572 = vmatprep.mubr.f32.mxu0 0.0
    %1573 = vmatmul.mubr.f32.gmra.mrb[0].mxu0 %v1503
    %v1574 = vpop.f32.mrb[0].mxu0
    %v1575 = vadd.f32 %v1501, %v1574
    %v1576 = vpop.f32.mrb[0].mxu0
    %1577 = vmatprep.mubr.f32.mxu0 0.0
    %1578 = vmatmul.mubr.f32.gmra.mrb[0].mxu0 %v1506
    %v1579 = vpop.f32.mrb[0].mxu0
    %v1580 = vadd.f32 %v1501, %v1579
    %v1581 = vpop.f32.mrb[0].mxu0
    %1582 = vdwg.mxu0
    %v1583 = vadd.f32 %v59, %v1575
    %v1584 = vadd.f32 %v60, %v1580
    %v1585 = vsel %vm65, %v1583, 0.0
    %1586 = vadd.xlane.f32.xlu0 %v1585
    %v1587 = vpop.xlane.xlu0 %1586
    %v1588 = vsel %vm65, %v1584, 0.0
    %1589 = vadd.xlane.f32.xlu0 %v1588
    %v1590 = vpop.xlane.xlu0 %1589
    %v1591 = vrcp.pop 32.0
    %v1592 = vmul.f32 %v1587, %v1591
    %v1593 = vmul.f32 %v1590, %v1591
    %v1594 = vsub.f32 %v1583, %v1592
    %v1595 = vsub.f32 %v1584, %v1593
    %v1596 = vmul.f32 %v1594, %v1594
    %v1597 = vmul.f32 %v1595, %v1595
    %v1598 = vsel %vm65, %v1596, 0.0
    %1599 = vadd.xlane.f32.xlu0 %v1598
    %v1600 = vpop.xlane.xlu0 %1599
    %v1601 = vsel %vm65, %v1597, 0.0
    %1602 = vadd.xlane.f32.xlu0 %v1601
    %v1603 = vpop.xlane.xlu0 %1602
    %v1604 = vmul.f32 %v1600, %v1591
    %v1605 = vmul.f32 %v1603, %v1591
    %v1606 = vadd.f32 %v1604, 1e-05
    %v1607 = vadd.f32 %v1605, 1e-05
    %v1608 = vrsqrt.pop %v1606
    %v1609 = vrsqrt.pop %v1607
    %v1610 = vmul.f32 %v1594, %v1608
    %v1611 = vmul.f32 %v1595, %v1609
    %v1612 = vlaneseq
    %v1613 = vshrl.u32 %v1612, 7
    %v1614 = vsub.s32 0, %v1613
    %v1615 = vrot.slane %v55, %v1614
    %v1616 = vmul.f32 %v1610, %v1615
    %v1617 = vmul.f32 %v1611, %v1615
    %v1618 = vlaneseq
    %v1619 = vshrl.u32 %v1618, 7
    %v1620 = vsub.s32 0, %v1619
    %v1621 = vrot.slane %v56, %v1620
    %v1622 = vadd.f32 %v1616, %v1621
    %v1623 = vadd.f32 %v1617, %v1621
    %v1624 = vlaneseq
    %v1625 = vshrl.u32 %v1624, 7
    %v1626 = vsub.s32 0, %v1625
    %v1627 = vrot.slane %v53, %v1626
    %v1629 = vsel %vm65, %v1622, 0
    %v1632 = vsel %vm65, %v1623, 0
    %1634 = vmatprep.subr.mxu0 0.0
    %1635 = vmatpush1.msra.mxu0 %v39
    %1636 = vmatprep.subr.mxu0 0.0
    %1637 = vmatpush1.msra.mxu0 %v40
    %1638 = vmatprep.subr.mxu0 0.0
    %1639 = vmatpush1.msra.mxu0 %v41
    %1640 = vmatprep.subr.mxu0 0.0
    %1641 = vmatpush1.msra.mxu0 %v42
    %1642 = vmatprep.subr.mxu0 0.0
    %1643 = vmatpush1.msra.mxu0 0.0
    %1644 = vmatprep.subr.mxu0 0.0
    %1645 = vmatpush1.msra.mxu0 0.0
    %1646 = vmatprep.subr.mxu0 0.0
    %1647 = vmatpush1.msra.mxu0 0.0
    %1648 = vmatprep.subr.mxu0 0.0
    %1649 = vmatpush1.msra.mxu0 0.0
    %1650 = vmatprep.subr.mxu0 0.0
    %1651 = vmatpush1.msra.mxu0 0.0
    %1652 = vmatprep.subr.mxu0 0.0
    %1653 = vmatpush1.msra.mxu0 0.0
    %1654 = vmatprep.subr.mxu0 0.0
    %1655 = vmatpush1.msra.mxu0 0.0
    %1656 = vmatprep.subr.mxu0 0.0
    %1657 = vmatpush1.msra.mxu0 0.0
    %1658 = vmatprep.subr.mxu0 0.0
    %1659 = vmatpush1.msra.mxu0 0.0
    %1660 = vmatprep.subr.mxu0 0.0
    %1661 = vmatpush1.msra.mxu0 0.0
    %1662 = vmatprep.subr.mxu0 0.0
    %1663 = vmatpush1.msra.mxu0 0.0
    %1664 = vmatprep.subr.mxu0 0.0
    %1665 = vmatpush1.msra.mxu0 0.0
    %1666 = vmatprep.subr.mxu0 0.0
    %1667 = vmatpush1.msra.mxu0 0.0
    %1668 = vmatprep.subr.mxu0 0.0
    %1669 = vmatpush1.msra.mxu0 0.0
    %1670 = vmatprep.subr.mxu0 0.0
    %1671 = vmatpush1.msra.mxu0 0.0
    %1672 = vmatprep.subr.mxu0 0.0
    %1673 = vmatpush1.msra.mxu0 0.0
    %1674 = vmatprep.subr.mxu0 0.0
    %1675 = vmatpush1.msra.mxu0 0.0
    %1676 = vmatprep.subr.mxu0 0.0
    %1677 = vmatpush1.msra.mxu0 0.0
    %1678 = vmatprep.subr.mxu0 0.0
    %1679 = vmatpush1.msra.mxu0 0.0
    %1680 = vmatprep.subr.mxu0 0.0
    %1681 = vmatpush1.msra.mxu0 0.0
    %1682 = vmatprep.subr.mxu0 0.0
    %1683 = vmatpush1.msra.mxu0 0.0
    %1684 = vmatprep.subr.mxu0 0.0
    %1685 = vmatpush1.msra.mxu0 0.0
    %1686 = vmatprep.subr.mxu0 0.0
    %1687 = vmatpush1.msra.mxu0 0.0
    %1688 = vmatprep.subr.mxu0 0.0
    %1689 = vmatpush1.msra.mxu0 0.0
    %1690 = vmatprep.subr.mxu0 0.0
    %1691 = vmatpush1.msra.mxu0 0.0
    %1692 = vmatprep.subr.mxu0 0.0
    %1693 = vmatpush1.msra.mxu0 0.0
    %1694 = vmatprep.subr.mxu0 0.0
    %1695 = vmatpush1.msra.mxu0 0.0
    %1696 = vmatprep.subr.mxu0 0.0
    %1697 = vmatpush1.msra.mxu0 0.0
    %1698 = vmatprep.mubr.f32.mxu0 0.0
    %1699 = vmatmul.mubr.f32.gmra.mrb[0].mxu0 %v1629
    %v1700 = vpop.f32.mrb[0].mxu0
    %v1701 = vadd.f32 %v1627, %v1700
    %v1702 = vpop.f32.mrb[0].mxu0
    %1703 = vmatprep.mubr.f32.mxu0 0.0
    %1704 = vmatmul.mubr.f32.gmra.mrb[0].mxu0 %v1632
    %v1705 = vpop.f32.mrb[0].mxu0
    %v1706 = vadd.f32 %v1627, %v1705
    %v1707 = vpop.f32.mrb[0].mxu0
    %1708 = vdwg.mxu0
    %v1709 = vmax.f32 %v1701, 0.0
    %v1710 = vmax.f32 %v1706, 0.0
    %v1711 = vlaneseq
    %v1712 = vshrl.u32 %v1711, 7
    %v1713 = vsub.s32 0, %v1712
    %v1714 = vrot.slane %v54, %v1713
    %vm1715 = vcmask 523264
    %v1717 = vsel %vm1715, %v1709, 0
    %v1720 = vsel %vm1715, %v1710, 0
    %1722 = vmatprep.subr.mxu0 0.0
    %1723 = vmatpush1.msra.mxu0 %v43
    %1724 = vmatprep.subr.mxu0 0.0
    %1725 = vmatpush1.msra.mxu0 %v44
    %1726 = vmatprep.subr.mxu0 0.0
    %1727 = vmatpush1.msra.mxu0 %v45
    %1728 = vmatprep.subr.mxu0 0.0
    %1729 = vmatpush1.msra.mxu0 %v46
    %1730 = vmatprep.subr.mxu0 0.0
    %1731 = vmatpush1.msra.mxu0 %v47
    %1732 = vmatprep.subr.mxu0 0.0
    %1733 = vmatpush1.msra.mxu0 %v48
    %1734 = vmatprep.subr.mxu0 0.0
    %1735 = vmatpush1.msra.mxu0 %v49
    %1736 = vmatprep.subr.mxu0 0.0
    %1737 = vmatpush1.msra.mxu0 %v50
    %1738 = vmatprep.subr.mxu0 0.0
    %1739 = vmatpush1.msra.mxu0 0.0
    %1740 = vmatprep.subr.mxu0 0.0
    %1741 = vmatpush1.msra.mxu0 0.0
    %1742 = vmatprep.subr.mxu0 0.0
    %1743 = vmatpush1.msra.mxu0 0.0
    %1744 = vmatprep.subr.mxu0 0.0
    %1745 = vmatpush1.msra.mxu0 0.0
    %1746 = vmatprep.subr.mxu0 0.0
    %1747 = vmatpush1.msra.mxu0 0.0
    %1748 = vmatprep.subr.mxu0 0.0
    %1749 = vmatpush1.msra.mxu0 0.0
    %1750 = vmatprep.subr.mxu0 0.0
    %1751 = vmatpush1.msra.mxu0 0.0
    %1752 = vmatprep.subr.mxu0 0.0
    %1753 = vmatpush1.msra.mxu0 0.0
    %1754 = vmatprep.subr.mxu0 0.0
    %1755 = vmatpush1.msra.mxu0 0.0
    %1756 = vmatprep.subr.mxu0 0.0
    %1757 = vmatpush1.msra.mxu0 0.0
    %1758 = vmatprep.subr.mxu0 0.0
    %1759 = vmatpush1.msra.mxu0 0.0
    %1760 = vmatprep.subr.mxu0 0.0
    %1761 = vmatpush1.msra.mxu0 0.0
    %1762 = vmatprep.subr.mxu0 0.0
    %1763 = vmatpush1.msra.mxu0 0.0
    %1764 = vmatprep.subr.mxu0 0.0
    %1765 = vmatpush1.msra.mxu0 0.0
    %1766 = vmatprep.subr.mxu0 0.0
    %1767 = vmatpush1.msra.mxu0 0.0
    %1768 = vmatprep.subr.mxu0 0.0
    %1769 = vmatpush1.msra.mxu0 0.0
    %1770 = vmatprep.subr.mxu0 0.0
    %1771 = vmatpush1.msra.mxu0 0.0
    %1772 = vmatprep.subr.mxu0 0.0
    %1773 = vmatpush1.msra.mxu0 0.0
    %1774 = vmatprep.subr.mxu0 0.0
    %1775 = vmatpush1.msra.mxu0 0.0
    %1776 = vmatprep.subr.mxu0 0.0
    %1777 = vmatpush1.msra.mxu0 0.0
    %1778 = vmatprep.subr.mxu0 0.0
    %1779 = vmatpush1.msra.mxu0 0.0
    %1780 = vmatprep.subr.mxu0 0.0
    %1781 = vmatpush1.msra.mxu0 0.0
    %1782 = vmatprep.subr.mxu0 0.0
    %1783 = vmatpush1.msra.mxu0 0.0
    %1784 = vmatprep.subr.mxu0 0.0
    %1785 = vmatpush1.msra.mxu0 0.0
    %1786 = vmatprep.mubr.f32.mxu0 0.0
    %1787 = vmatmul.mubr.f32.gmra.mrb[0].mxu0 %v1717
    %v1788 = vpop.f32.mrb[0].mxu0
    %v1789 = vadd.f32 %v1714, %v1788
    %v1790 = vpop.f32.mrb[0].mxu0
    %1791 = vmatprep.mubr.f32.mxu0 0.0
    %1792 = vmatmul.mubr.f32.gmra.mrb[0].mxu0 %v1720
    %v1793 = vpop.f32.mrb[0].mxu0
    %v1794 = vadd.f32 %v1714, %v1793
    %v1795 = vpop.f32.mrb[0].mxu0
    %1796 = vdwg.mxu0
    %v1797 = vadd.f32 %v1622, %v1789
    %v1798 = vadd.f32 %v1623, %v1794
    %v1799 = vsel %vm65, %v1797, 0.0
    %1800 = vadd.xlane.f32.xlu0 %v1799
    %v1801 = vpop.xlane.xlu0 %1800
    %v1802 = vsel %vm65, %v1798, 0.0
    %1803 = vadd.xlane.f32.xlu0 %v1802
    %v1804 = vpop.xlane.xlu0 %1803
    %v1805 = vmul.f32 %v1801, %v1591
    %v1806 = vmul.f32 %v1804, %v1591
    %v1807 = vsub.f32 %v1797, %v1805
    %v1808 = vsub.f32 %v1798, %v1806
    %v1809 = vmul.f32 %v1807, %v1807
    %v1810 = vmul.f32 %v1808, %v1808
    %v1811 = vsel %vm65, %v1809, 0.0
    %1812 = vadd.xlane.f32.xlu0 %v1811
    %v1813 = vpop.xlane.xlu0 %1812
    %v1814 = vsel %vm65, %v1810, 0.0
    %1815 = vadd.xlane.f32.xlu0 %v1814
    %v1816 = vpop.xlane.xlu0 %1815
    %v1817 = vmul.f32 %v1813, %v1591
    %v1818 = vmul.f32 %v1816, %v1591
    %v1819 = vadd.f32 %v1817, 1e-05
    %v1820 = vadd.f32 %v1818, 1e-05
    %v1821 = vrsqrt.pop %v1819
    %v1822 = vrsqrt.pop %v1820
    %v1823 = vmul.f32 %v1807, %v1821
    %v1824 = vmul.f32 %v1808, %v1822
    %v1825 = vlaneseq
    %v1826 = vshrl.u32 %v1825, 7
    %v1827 = vsub.s32 0, %v1826
    %v1828 = vrot.slane %v57, %v1827
    %v1829 = vmul.f32 %v1823, %v1828
    %v1830 = vmul.f32 %v1824, %v1828
    %v1831 = vlaneseq
    %v1832 = vshrl.u32 %v1831, 7
    %v1833 = vsub.s32 0, %v1832
    %v1834 = vrot.slane %v58, %v1833
    %v1835 = vadd.f32 %v1829, %v1834
    %v1836 = vadd.f32 %v1830, %v1834
    %v1837 = vadd.f32 %v843, 0.0
    %v1838 = vadd.f32 %v845, 0.0
    %v1839 = vadd.f32 %v1837, %v847
    %v1840 = vadd.f32 %v1838, %v849
    %v1841 = vadd.f32 %v1839, %v851
    %v1842 = vadd.f32 %v1840, %v853
    %v1843 = vadd.f32 %v1841, %v855
    %v1844 = vadd.f32 %v1842, %v857
    %v1845 = vmul.f32 %v1843, 0.25
    %v1846 = vmul.f32 %v1844, 0.25
    %1849 = vrot.lane.b32.xlu0 %v1845, 32
    %v1850 = vpop.permute.xlu0 %1849
    %1851 = vrot.lane.b32.xlu0 %v1846, 32
    %v1852 = vpop.permute.xlu0 %1851
    %v1855 = vsel %vm65, %v1835, %v1850
    %v1856 = vsel %vm65, %v1836, %v1852
    %vm1857 = vcmask 326656
    %v1858 = vsel %vm1857, %v1855, 0.0
    %v1859 = vsel %vm1857, %v1856, 0.0
    %1860 = vst [vmem:[%s4] sm:$0xff] %v1858
    %1861 = vst [vmem:[%s4 + $0x8] sm:$0xff] %v1859
    // Predicated region
    $region22: #{encoder_layer_forward.1} parent=1 // pred_check
      _
    $region23: #{encoder_layer_forward.1} parent=1 // pred_check_branch
      %1863 = sbr.rel (0) target = $region25
    $region24: #{encoder_layer_forward.1} parent=1 // pred_region
      _
    $region25: #{encoder_layer_forward.1} parent=1 // pred_fallthru
      _
    // Predicated region
    $region26: #{encoder_layer_forward.1} parent=1 // pred_check
      _
    $region27: #{encoder_layer_forward.1} parent=1 // pred_check_branch
      %1865 = sbr.rel (0) target = $region29
    $region28: #{encoder_layer_forward.1} parent=1 // pred_region
      _
    $region29: #{encoder_layer_forward.1} parent=1 // pred_fallthru
      _
    %1866 = vsyncpa [#allocation3], 1

</llo_original>
